<compile_context>
chip_gen: v5e
topology: v5e:2x2
jax: 0.10.0
libtpu: 0.0.40
codegen_flags: <defaults>
</compile_context>

<pallas_src>
import math
import numpy as np
import jax
import jax.numpy as jnp
from jax.experimental import pallas as pl
from jax.experimental.pallas import tpu as pltpu

# ---- AudioWaveformTransforms hyper-params (defaults; small demo target length) ----
SAMPLE_RATE = 16000
NEW_SAMPLE_RATE = 8000
TARGET_LENGTH = 2048                       # PadWaveform target length (small demo size)
AUGMENT_MAGNITUDE = 2
NOISE_LEVEL = 0.0025 * AUGMENT_MAGNITUDE   # AudioAugmentations.apply_time_augmentation

# torchaudio Resample defaults (sinc_interp_hann)
LOWPASS_FILTER_WIDTH = 6
ROLLOFF = 0.99

# ---- kernel tiling constants ----
PAD_LEFT = 64                    # lane-aligned left zero pad folded into the weight offset
HALO = 2 * PAD_LEFT              # right-halo columns needed by the last sub-block (128)
ROW_BLK = 8                      # rows per grid block (full f32 sublane)
OUT_COLS_PER_STEP = 1024         # output columns produced per grid step
W_STEP = 2 * OUT_COLS_PER_STEP   # input columns consumed per grid step (2048)

assert W_STEP % HALO == 0 and HALO % 128 == 0


def _mxu_nblk() -> int:
    """Output-block width per matmul: 256 on 256-wide MXUs (v6e/v7x), else 128."""
    try:
        kind = jax.devices()[0].device_kind.lower()
    except Exception:
        return 128
    return 256 if any(s in kind for s in ("v6", "v7", "7x")) else 128


def _sinc_resample_taps(orig_freq: int, new_freq: int):
    """Replicates torchaudio's _get_sinc_resample_kernel (sinc_interp_hann)."""
    gcd = math.gcd(orig_freq, new_freq)
    orig = orig_freq // gcd
    new = new_freq // gcd
    base_freq = min(orig, new) * ROLLOFF
    width = math.ceil(LOWPASS_FILTER_WIDTH * orig / base_freq)
    idx = np.arange(-width, width + orig, dtype=np.float64) / orig   # (K,)
    kernels = []
    for i in range(new):
        t = (-i / new + idx) * base_freq
        t = np.clip(t, -LOWPASS_FILTER_WIDTH, LOWPASS_FILTER_WIDTH)
        window = np.cos(t * np.pi / LOWPASS_FILTER_WIDTH / 2.0) ** 2
        tp = t * np.pi
        safe = np.where(tp == 0.0, 1.0, tp)
        k = np.where(tp == 0.0, 1.0, np.sin(tp) / safe) * window * (base_freq / orig)
        kernels.append(k)
    return np.stack(kernels).astype(np.float32), width, orig, new


def _toeplitz_weight(taps: np.ndarray, width: int, nblk: int, kc: int) -> np.ndarray:
    """Banded stride-2 Toeplitz weight W (kc, nblk) with the filter taps baked in:
       out[r, j'] = sum_i xwin[r, i] * W[i, j'] = sum_k taps[k] * xp[r, 2*j' + k + OFF]."""
    K = int(taps.shape[0])
    off = PAD_LEFT - width
    assert 0 <= off and 2 * (nblk - 1) + (K - 1) + off < kc, "kc/PAD_LEFT too small for taps"
    w = np.zeros((kc, nblk), np.float32)
    for jp in range(nblk):
        w[2 * jp + off: 2 * jp + off + K, jp] = taps
    return w


def _make_kernel(row_blk, nblk, sub, kc, w_step, l_out, n_steps, add_noise):
    n_full = l_out // nblk            # output blocks that are entirely < l_out (no mask)
    n_valid = -(-l_out // nblk)       # output blocks containing any valid column

    def kernel(*refs):
        if add_noise:
            xa_ref, xh_ref, w_ref, nz_ref, out_ref = refs
        else:
            xa_ref, xh_ref, w_ref, out_ref = refs
        t = pl.program_id(1)

        for j in range(sub):                     # static unroll: sub MXU matmuls / step
            c0, c1 = j * nblk, (j + 1) * nblk
            min_g = j                            # block index at t == 0
            max_g = (n_steps - 1) * sub + j      # block index at the last step

            if min_g >= n_valid:
                # Statically past the resampled signal for every step: skip the matmul,
                # PadWaveform zero-fill (noise still added below, matching pad->augment).
                y = jnp.zeros((row_blk, nblk), jnp.float32)
            else:
                s0 = j * 2 * nblk                # window start inside this step's block
                if j < sub - 1:                  # window fully inside the main block
                    y = jnp.dot(xa_ref[:, s0:s0 + kc], w_ref[...],
                                preferred_element_type=jnp.float32)
                else:                            # last window spills into the halo block
                    na = w_step - s0             # = 2*nblk columns left in the main block
                    y = jnp.dot(xa_ref[:, s0:], w_ref[:na, :],
                                preferred_element_type=jnp.float32)
                    y = y + jnp.dot(xh_ref[...], w_ref[na:, :],
                                    preferred_element_type=jnp.float32)
                if max_g >= n_full:
                    # Only blocks that can straddle/exceed l_out pay for the iota+select;
                    # statically fully-valid blocks store the matmul result directly.
                    g = t * sub + j
                    cols = (jax.lax.broadcasted_iota(jnp.int32, (row_blk, nblk), 1)
                            + g * nblk)
                    y = jnp.where(cols < l_out, y, 0.0)

            if add_noise:
                y = y + nz_ref[:, c0:c1].astype(jnp.float32)
            out_ref[:, c0:c1] = y                # lane-dense, unmasked 128/256-wide store
    return kernel


def audio_waveform_transforms(x: jax.Array, seed: int = 0, augmentation: bool = True):
    """x: (..., T) waveform. Returns (..., TARGET_LENGTH) float32 (resample->pad->noise)."""
    lead, T = x.shape[:-1], x.shape[-1]
    r0 = int(np.prod(lead)) if lead else 1
    rows = max(ROW_BLK, -(-r0 // ROW_BLK) * ROW_BLK)

    nblk = _mxu_nblk()                              # 128 (v5e/fallback) or 256 (v6e/v7x)
    sub = OUT_COLS_PER_STEP // nblk
    kc = 2 * nblk + 2 * PAD_LEFT                    # contraction length per matmul
    assert PAD_LEFT <= nblk and kc % 128 == 0 and OUT_COLS_PER_STEP % nblk == 0

    taps2d, width, orig, new = _sinc_resample_taps(SAMPLE_RATE, NEW_SAMPLE_RATE)
    assert orig == 2 and new == 1, "kernel specialized to 16 kHz -> 8 kHz (2:1)"
    taps = taps2d[0]                                # (K,) = (28,)
    l_out = -(-new * T // orig)                     # ceil(T/2): resampled length

    target_pad = -(-TARGET_LENGTH // OUT_COLS_PER_STEP) * OUT_COLS_PER_STEP
    n_steps = target_pad // OUT_COLS_PER_STEP
    lpad = n_steps * W_STEP + HALO                  # exact coverage of all blocks

    # Single wrapper-side layout op: lane-aligned zero pad (+ row pad), then bf16 for the
    # MXU (accumulation stays f32 in-kernel).
    xf = x.reshape(r0, T).astype(jnp.float32)
    n_copy = min(T, lpad - PAD_LEFT)
    xp = jnp.pad(xf[:, :n_copy],
                 ((0, rows - r0), (PAD_LEFT, lpad - PAD_LEFT - n_copy))
                 ).astype(jnp.bfloat16)

    w = jnp.asarray(_toeplitz_weight(taps, width, nblk, kc)).astype(jnp.bfloat16)

    inputs = [xp, xp, w]
    in_specs = [
        # main (ROW_BLK, 2048) input window for this step
        pl.BlockSpec((ROW_BLK, W_STEP), lambda r, t: (r, t)),
        # (ROW_BLK, 128) right halo (same array, next window's head)
        pl.BlockSpec((ROW_BLK, HALO), lambda r, t: (r, (t + 1) * (W_STEP // HALO))),
        # constant Toeplitz weight, resident across the grid
        pl.BlockSpec((kc, nblk), lambda r, t: (0, 0)),
    ]
    if augmentation:
        # TODO(synk): in-kernel pltpu.prng_seed/stateful_normal would remove this
        # output-sized noise DMA, but those primitives have no interpret-mode lowering
        # (and torch.randn_like's RNG stream cannot be reproduced either way), so the
        # noise is drawn host-side, pre-scaled, and streamed in as bf16.
        noise = (jax.random.normal(jax.random.PRNGKey(seed), (rows, target_pad),
                                   dtype=jnp.float32) * NOISE_LEVEL).astype(jnp.bfloat16)
        inputs.append(noise)
        in_specs.append(pl.BlockSpec((ROW_BLK, OUT_COLS_PER_STEP), lambda r, t: (r, t)))

    out = pl.pallas_call(
        _make_kernel(ROW_BLK, nblk, sub, kc, W_STEP, l_out, n_steps, bool(augmentation)),
        out_shape=jax.ShapeDtypeStruct((rows, target_pad), jnp.float32),
        grid_spec=pltpu.PrefetchScalarGridSpec(
            num_scalar_prefetch=0,
            grid=(rows // ROW_BLK, n_steps),        # rows axis keeps both v7x TCs busy
            in_specs=in_specs,
            out_specs=pl.BlockSpec((ROW_BLK, OUT_COLS_PER_STEP), lambda r, t: (r, t)),
        ),
        compiler_params=pltpu.CompilerParams(
            dimension_semantics=("parallel", "parallel"),
            vmem_limit_bytes=32 * 1024 * 1024,      # explicit budget (v7x: 64 MiB phys)
        ),
    )(*inputs)

    return out[:r0, :TARGET_LENGTH].reshape(*lead, TARGET_LENGTH)


def _reference(x, taps, width, orig):
    """Plain-JAX exact-f32 reference mirroring the PyTorch pipeline (without noise)."""
    lead, T = x.shape[:-1], x.shape[-1]
    r0 = int(np.prod(lead)) if lead else 1
    xf = x.reshape(r0, T).astype(jnp.float32)
    l_out = -(-T // orig)
    xpad = jnp.pad(xf, ((0, 0), (width, width + orig)))
    res = jnp.zeros((r0, l_out), jnp.float32)
    for k in range(int(taps.shape[0])):              # exact f32 shifted-slice conv
        res = res + taps[k] * xpad[:, k: k + orig * l_out: orig]
    if l_out < TARGET_LENGTH:
        res = jnp.pad(res, ((0, 0), (0, TARGET_LENGTH - l_out)))
    else:
        res = res[:, :TARGET_LENGTH]
    return res.reshape(*lead, TARGET_LENGTH)


if __name__ == "__main__":
    B, C, T = 4, 2, 3968           # B*C = 8 rows (full sublanes); resampled 1984 < 2048 -> pad
    x = jax.random.normal(jax.random.PRNGKey(0), (B, C, T), dtype=jnp.float32)

    out_aug = audio_waveform_transforms(x, seed=1234, augmentation=True)
    out_clean = audio_waveform_transforms(x, seed=1234, augmentation=False)
    jax.block_until_ready((out_aug, out_clean))

    assert out_aug.shape == (B, C, TARGET_LENGTH)
    assert out_clean.shape == (B, C, TARGET_LENGTH)

    taps2d, width, orig, _ = _sinc_resample_taps(SAMPLE_RATE, NEW_SAMPLE_RATE)
    ref = _reference(x, jnp.asarray(taps2d[0]), width, orig)

    # Resample + PadWaveform path (tolerance budgets for bf16 MXU operands, f32 accumulate).
    assert bool(jnp.allclose(out_clean, ref, atol=2e-2, rtol=2e-2)), "resample/pad mismatch"

    # Augmentation path: residual must be i.i.d. unit-normal noise scaled by NOISE_LEVEL.
    resid = (out_aug - out_clean) / NOISE_LEVEL
    assert abs(float(jnp.mean(resid))) < 0.05, "noise mean off"
    assert abs(float(jnp.std(resid)) - 1.0) < 0.2, "noise std off"

    print("KERNEL_OK")
</pallas_src>

<mosaic_0001>
module attributes {stable_mosaic.version = 11 : i64} {
  func.func @kernel(%arg0: i32, %arg1: i32, %arg2: memref<8x2048xbf16, #tpu.memory_space<vmem>>, %arg3: memref<8x128xbf16, #tpu.memory_space<vmem>>, %arg4: memref<384x128xbf16, #tpu.memory_space<vmem>>, %arg5: memref<8x1024xbf16, #tpu.memory_space<vmem>>, %arg6: memref<8x1024xf32, #tpu.memory_space<vmem>>) attributes {dimension_semantics = [#tpu.dimension_semantics<parallel>, #tpu.dimension_semantics<parallel>], iteration_bounds = array<i64: 1, 2>, scalar_prefetch = 0 : i64, scratch_operands = 0 : i64, tpu.core_type = #tpu.core_type<tc>, window_params = [{transform_indices = @transform_0, window_bounds = array<i64: 8, 2048>}, {transform_indices = @transform_1, window_bounds = array<i64: 8, 128>}, {pipeline_mode = #tpu.pipeline_mode<synchronous>, transform_indices = @transform_2, window_bounds = array<i64: 384, 128>}, {transform_indices = @transform_3, window_bounds = array<i64: 8, 1024>}, {transform_indices = @transform_4, window_bounds = array<i64: 8, 1024>}]} {
    %c0 = arith.constant 0 : index
    %c0_0 = arith.constant 0 : index
    %0 = vector.load %arg2[%c0, %c0_0] : memref<8x2048xbf16, #tpu.memory_space<vmem>>, vector<8x384xbf16>
    %c0_1 = arith.constant 0 : index
    %c0_2 = arith.constant 0 : index
    %1 = vector.load %arg4[%c0_1, %c0_2] : memref<384x128xbf16, #tpu.memory_space<vmem>>, vector<384x128xbf16>
    %cst = arith.constant dense<0.000000e+00> : vector<8x128xf32>
    %2 = tpu.matmul %0, %1, %cst {dimension_numbers = #tpu.dot_dimension_numbers<[1], [0], [0], [1], [0, 0, 1, 1], [], []>} : vector<8x384xbf16>, vector<384x128xbf16>, vector<8x128xf32> -> vector<8x128xf32>
    %c0_3 = arith.constant 0 : index
    %c0_4 = arith.constant 0 : index
    %3 = vector.load %arg5[%c0_3, %c0_4] : memref<8x1024xbf16, #tpu.memory_space<vmem>>, vector<8x128xbf16>
    %4 = arith.extf %3 : vector<8x128xbf16> to vector<8x128xf32>
    %5 = arith.addf %2, %4 : vector<8x128xf32>
    %c0_5 = arith.constant 0 : index
    %c0_6 = arith.constant 0 : index
    %6 = vector.load %arg6[%c0_5, %c0_6] : memref<8x1024xf32, #tpu.memory_space<vmem>>, vector<8x128xf32>
    tpu.vector_store %arg6[%c0_5, %c0_6], %5 {strides = array<i32>} : memref<8x1024xf32, #tpu.memory_space<vmem>>, vector<8x128xf32>,
    %c0_7 = arith.constant 0 : index
    %c256 = arith.constant 256 : index
    %7 = vector.load %arg2[%c0_7, %c256] : memref<8x2048xbf16, #tpu.memory_space<vmem>>, vector<8x384xbf16>
    %c0_8 = arith.constant 0 : index
    %c0_9 = arith.constant 0 : index
    %8 = vector.load %arg4[%c0_8, %c0_9] : memref<384x128xbf16, #tpu.memory_space<vmem>>, vector<384x128xbf16>
    %cst_10 = arith.constant dense<0.000000e+00> : vector<8x128xf32>
    %9 = tpu.matmul %7, %8, %cst_10 {dimension_numbers = #tpu.dot_dimension_numbers<[1], [0], [0], [1], [0, 0, 1, 1], [], []>} : vector<8x384xbf16>, vector<384x128xbf16>, vector<8x128xf32> -> vector<8x128xf32>
    %c0_11 = arith.constant 0 : index
    %c128 = arith.constant 128 : index
    %10 = vector.load %arg5[%c0_11, %c128] : memref<8x1024xbf16, #tpu.memory_space<vmem>>, vector<8x128xbf16>
    %11 = arith.extf %10 : vector<8x128xbf16> to vector<8x128xf32>
    %12 = arith.addf %9, %11 : vector<8x128xf32>
    %c0_12 = arith.constant 0 : index
    %c128_13 = arith.constant 128 : index
    %13 = vector.load %arg6[%c0_12, %c128_13] : memref<8x1024xf32, #tpu.memory_space<vmem>>, vector<8x128xf32>
    tpu.vector_store %arg6[%c0_12, %c128_13], %12 {strides = array<i32>} : memref<8x1024xf32, #tpu.memory_space<vmem>>, vector<8x128xf32>,
    %c0_14 = arith.constant 0 : index
    %c512 = arith.constant 512 : index
    %14 = vector.load %arg2[%c0_14, %c512] : memref<8x2048xbf16, #tpu.memory_space<vmem>>, vector<8x384xbf16>
    %c0_15 = arith.constant 0 : index
    %c0_16 = arith.constant 0 : index
    %15 = vector.load %arg4[%c0_15, %c0_16] : memref<384x128xbf16, #tpu.memory_space<vmem>>, vector<384x128xbf16>
    %cst_17 = arith.constant dense<0.000000e+00> : vector<8x128xf32>
    %16 = tpu.matmul %14, %15, %cst_17 {dimension_numbers = #tpu.dot_dimension_numbers<[1], [0], [0], [1], [0, 0, 1, 1], [], []>} : vector<8x384xbf16>, vector<384x128xbf16>, vector<8x128xf32> -> vector<8x128xf32>
    %c0_18 = arith.constant 0 : index
    %c256_19 = arith.constant 256 : index
    %17 = vector.load %arg5[%c0_18, %c256_19] : memref<8x1024xbf16, #tpu.memory_space<vmem>>, vector<8x128xbf16>
    %18 = arith.extf %17 : vector<8x128xbf16> to vector<8x128xf32>
    %19 = arith.addf %16, %18 : vector<8x128xf32>
    %c0_20 = arith.constant 0 : index
    %c256_21 = arith.constant 256 : index
    %20 = vector.load %arg6[%c0_20, %c256_21] : memref<8x1024xf32, #tpu.memory_space<vmem>>, vector<8x128xf32>
    tpu.vector_store %arg6[%c0_20, %c256_21], %19 {strides = array<i32>} : memref<8x1024xf32, #tpu.memory_space<vmem>>, vector<8x128xf32>,
    %c0_22 = arith.constant 0 : index
    %c768 = arith.constant 768 : index
    %21 = vector.load %arg2[%c0_22, %c768] : memref<8x2048xbf16, #tpu.memory_space<vmem>>, vector<8x384xbf16>
    %c0_23 = arith.constant 0 : index
    %c0_24 = arith.constant 0 : index
    %22 = vector.load %arg4[%c0_23, %c0_24] : memref<384x128xbf16, #tpu.memory_space<vmem>>, vector<384x128xbf16>
    %cst_25 = arith.constant dense<0.000000e+00> : vector<8x128xf32>
    %23 = tpu.matmul %21, %22, %cst_25 {dimension_numbers = #tpu.dot_dimension_numbers<[1], [0], [0], [1], [0, 0, 1, 1], [], []>} : vector<8x384xbf16>, vector<384x128xbf16>, vector<8x128xf32> -> vector<8x128xf32>
    %c0_26 = arith.constant 0 : index
    %c384 = arith.constant 384 : index
    %24 = vector.load %arg5[%c0_26, %c384] : memref<8x1024xbf16, #tpu.memory_space<vmem>>, vector<8x128xbf16>
    %25 = arith.extf %24 : vector<8x128xbf16> to vector<8x128xf32>
    %26 = arith.addf %23, %25 : vector<8x128xf32>
    %c0_27 = arith.constant 0 : index
    %c384_28 = arith.constant 384 : index
    %27 = vector.load %arg6[%c0_27, %c384_28] : memref<8x1024xf32, #tpu.memory_space<vmem>>, vector<8x128xf32>
    tpu.vector_store %arg6[%c0_27, %c384_28], %26 {strides = array<i32>} : memref<8x1024xf32, #tpu.memory_space<vmem>>, vector<8x128xf32>,
    %c0_29 = arith.constant 0 : index
    %c1024 = arith.constant 1024 : index
    %28 = vector.load %arg2[%c0_29, %c1024] : memref<8x2048xbf16, #tpu.memory_space<vmem>>, vector<8x384xbf16>
    %c0_30 = arith.constant 0 : index
    %c0_31 = arith.constant 0 : index
    %29 = vector.load %arg4[%c0_30, %c0_31] : memref<384x128xbf16, #tpu.memory_space<vmem>>, vector<384x128xbf16>
    %cst_32 = arith.constant dense<0.000000e+00> : vector<8x128xf32>
    %30 = tpu.matmul %28, %29, %cst_32 {dimension_numbers = #tpu.dot_dimension_numbers<[1], [0], [0], [1], [0, 0, 1, 1], [], []>} : vector<8x384xbf16>, vector<384x128xbf16>, vector<8x128xf32> -> vector<8x128xf32>
    %c0_33 = arith.constant 0 : index
    %c512_34 = arith.constant 512 : index
    %31 = vector.load %arg5[%c0_33, %c512_34] : memref<8x1024xbf16, #tpu.memory_space<vmem>>, vector<8x128xbf16>
    %32 = arith.extf %31 : vector<8x128xbf16> to vector<8x128xf32>
    %33 = arith.addf %30, %32 : vector<8x128xf32>
    %c0_35 = arith.constant 0 : index
    %c512_36 = arith.constant 512 : index
    %34 = vector.load %arg6[%c0_35, %c512_36] : memref<8x1024xf32, #tpu.memory_space<vmem>>, vector<8x128xf32>
    tpu.vector_store %arg6[%c0_35, %c512_36], %33 {strides = array<i32>} : memref<8x1024xf32, #tpu.memory_space<vmem>>, vector<8x128xf32>,
    %c0_37 = arith.constant 0 : index
    %c1280 = arith.constant 1280 : index
    %35 = vector.load %arg2[%c0_37, %c1280] : memref<8x2048xbf16, #tpu.memory_space<vmem>>, vector<8x384xbf16>
    %c0_38 = arith.constant 0 : index
    %c0_39 = arith.constant 0 : index
    %36 = vector.load %arg4[%c0_38, %c0_39] : memref<384x128xbf16, #tpu.memory_space<vmem>>, vector<384x128xbf16>
    %cst_40 = arith.constant dense<0.000000e+00> : vector<8x128xf32>
    %37 = tpu.matmul %35, %36, %cst_40 {dimension_numbers = #tpu.dot_dimension_numbers<[1], [0], [0], [1], [0, 0, 1, 1], [], []>} : vector<8x384xbf16>, vector<384x128xbf16>, vector<8x128xf32> -> vector<8x128xf32>
    %c0_41 = arith.constant 0 : index
    %c640 = arith.constant 640 : index
    %38 = vector.load %arg5[%c0_41, %c640] : memref<8x1024xbf16, #tpu.memory_space<vmem>>, vector<8x128xbf16>
    %39 = arith.extf %38 : vector<8x128xbf16> to vector<8x128xf32>
    %40 = arith.addf %37, %39 : vector<8x128xf32>
    %c0_42 = arith.constant 0 : index
    %c640_43 = arith.constant 640 : index
    %41 = vector.load %arg6[%c0_42, %c640_43] : memref<8x1024xf32, #tpu.memory_space<vmem>>, vector<8x128xf32>
    tpu.vector_store %arg6[%c0_42, %c640_43], %40 {strides = array<i32>} : memref<8x1024xf32, #tpu.memory_space<vmem>>, vector<8x128xf32>,
    %c0_44 = arith.constant 0 : index
    %c1536 = arith.constant 1536 : index
    %42 = vector.load %arg2[%c0_44, %c1536] : memref<8x2048xbf16, #tpu.memory_space<vmem>>, vector<8x384xbf16>
    %c0_45 = arith.constant 0 : index
    %c0_46 = arith.constant 0 : index
    %43 = vector.load %arg4[%c0_45, %c0_46] : memref<384x128xbf16, #tpu.memory_space<vmem>>, vector<384x128xbf16>
    %cst_47 = arith.constant dense<0.000000e+00> : vector<8x128xf32>
    %44 = tpu.matmul %42, %43, %cst_47 {dimension_numbers = #tpu.dot_dimension_numbers<[1], [0], [0], [1], [0, 0, 1, 1], [], []>} : vector<8x384xbf16>, vector<384x128xbf16>, vector<8x128xf32> -> vector<8x128xf32>
    %c0_48 = arith.constant 0 : index
    %c768_49 = arith.constant 768 : index
    %45 = vector.load %arg5[%c0_48, %c768_49] : memref<8x1024xbf16, #tpu.memory_space<vmem>>, vector<8x128xbf16>
    %46 = arith.extf %45 : vector<8x128xbf16> to vector<8x128xf32>
    %47 = arith.addf %44, %46 : vector<8x128xf32>
    %c0_50 = arith.constant 0 : index
    %c768_51 = arith.constant 768 : index
    %48 = vector.load %arg6[%c0_50, %c768_51] : memref<8x1024xf32, #tpu.memory_space<vmem>>, vector<8x128xf32>
    tpu.vector_store %arg6[%c0_50, %c768_51], %47 {strides = array<i32>} : memref<8x1024xf32, #tpu.memory_space<vmem>>, vector<8x128xf32>,
    %c0_52 = arith.constant 0 : index
    %c1792 = arith.constant 1792 : index
    %49 = vector.load %arg2[%c0_52, %c1792] : memref<8x2048xbf16, #tpu.memory_space<vmem>>, vector<8x256xbf16>
    %c0_53 = arith.constant 0 : index
    %c0_54 = arith.constant 0 : index
    %50 = vector.load %arg4[%c0_53, %c0_54] : memref<384x128xbf16, #tpu.memory_space<vmem>>, vector<256x128xbf16>
    %cst_55 = arith.constant dense<0.000000e+00> : vector<8x128xf32>
    %51 = tpu.matmul %49, %50, %cst_55 {dimension_numbers = #tpu.dot_dimension_numbers<[1], [0], [0], [1], [0, 0, 1, 1], [], []>} : vector<8x256xbf16>, vector<256x128xbf16>, vector<8x128xf32> -> vector<8x128xf32>
    %c0_56 = arith.constant 0 : index
    %c0_57 = arith.constant 0 : index
    %52 = vector.load %arg3[%c0_56, %c0_57] : memref<8x128xbf16, #tpu.memory_space<vmem>>, vector<8x128xbf16>
    %c256_58 = arith.constant 256 : index
    %c0_59 = arith.constant 0 : index
    %53 = vector.load %arg4[%c256_58, %c0_59] : memref<384x128xbf16, #tpu.memory_space<vmem>>, vector<128x128xbf16>
    %cst_60 = arith.constant dense<0.000000e+00> : vector<8x128xf32>
    %54 = tpu.matmul %52, %53, %cst_60 {dimension_numbers = #tpu.dot_dimension_numbers<[1], [0], [0], [1], [0, 0, 1, 1], [], []>} : vector<8x128xbf16>, vector<128x128xbf16>, vector<8x128xf32> -> vector<8x128xf32>
    %55 = arith.addf %51, %54 : vector<8x128xf32>
    %c8_i32 = arith.constant 8 : i32
    %56 = arith.muli %arg1, %c8_i32 : i32
    %c7_i32 = arith.constant 7 : i32
    %57 = arith.addi %56, %c7_i32 : i32
    %58 = tpu.iota {dimensions = array<i32: 1>} : vector<8x128xi32>
    %c128_i32 = arith.constant 128 : i32
    %59 = arith.muli %57, %c128_i32 : i32
    %60 = vector.broadcast %59 : i32 to vector<8x128xi32>
    %61 = arith.addi %58, %60 : vector<8x128xi32>
    %c1984_i32 = arith.constant 1984 : i32
    %62 = vector.broadcast %c1984_i32 : i32 to vector<8x128xi32>
    %63 = arith.cmpi slt, %61, %62 : vector<8x128xi32>
    %cst_61 = arith.constant 0.000000e+00 : f32
    %64 = vector.broadcast %cst_61 : f32 to vector<8x128xf32>
    %65 = arith.select %63, %55, %64 : vector<8x128xi1>, vector<8x128xf32>
    %c0_62 = arith.constant 0 : index
    %c896 = arith.constant 896 : index
    %66 = vector.load %arg5[%c0_62, %c896] : memref<8x1024xbf16, #tpu.memory_space<vmem>>, vector<8x128xbf16>
    %67 = arith.extf %66 : vector<8x128xbf16> to vector<8x128xf32>
    %68 = arith.addf %65, %67 : vector<8x128xf32>
    %c0_63 = arith.constant 0 : index
    %c896_64 = arith.constant 896 : index
    %69 = vector.load %arg6[%c0_63, %c896_64] : memref<8x1024xf32, #tpu.memory_space<vmem>>, vector<8x128xf32>
    tpu.vector_store %arg6[%c0_63, %c896_64], %68 {strides = array<i32>} : memref<8x1024xf32, #tpu.memory_space<vmem>>, vector<8x128xf32>,
    return
  }
  func.func @transform_0(%arg0: i32, %arg1: i32) -> (i32, i32) {
    %c0_i32 = arith.constant 0 : i32
    return %arg0, %arg1 : i32, i32
  }
  func.func @transform_1(%arg0: i32, %arg1: i32) -> (i32, i32) {
    %c1_i32 = arith.constant 1 : i32
    %0 = arith.addi %arg1, %c1_i32 : i32
    %c16_i32 = arith.constant 16 : i32
    %1 = arith.muli %0, %c16_i32 : i32
    %c0_i32 = arith.constant 0 : i32
    return %arg0, %1 : i32, i32
  }
  func.func @transform_2(%arg0: i32, %arg1: i32) -> (i32, i32) {
    %c0_i32 = arith.constant 0 : i32
    %c0_i32_0 = arith.constant 0 : i32
    %c0_i32_1 = arith.constant 0 : i32
    return %c0_i32, %c0_i32_0 : i32, i32
  }
  func.func @transform_3(%arg0: i32, %arg1: i32) -> (i32, i32) {
    %c0_i32 = arith.constant 0 : i32
    return %arg0, %arg1 : i32, i32
  }
  func.func @transform_4(%arg0: i32, %arg1: i32) -> (i32, i32) {
    %c0_i32 = arith.constant 0 : i32
    return %arg0, %arg1 : i32, i32
  }
}

</mosaic_0001>

<llo_original>
// kernel: tpu_custom_call.1
$region0: #{tpu_custom_call.1}
  #allocation0 [shape = 'u32[]', space=smem, size = 0x4, offset = 0x4, fixed_abs, tag = 'smem constant byte address 0x4 - core index']
  #allocation1 [shape = 'u32[72,128]{1,0:T(1,128)}', space=vmem, size = 0x9000, scoped, tag = 'internal scratch']
  %s0 = inlined_call_operand.hbm [shape: bf16[8,4224], index: 0, kind: input, shape index: {}]
  %s1 = inlined_call_operand.hbm [shape: bf16[8,4224], index: 1, kind: input, shape index: {}]
  %s2 = inlined_call_operand.hbm [shape: bf16[384,128], index: 2, kind: input, shape index: {}]
  %s3 = inlined_call_operand.hbm [shape: bf16[8,2048], index: 3, kind: input, shape index: {}]
  %s4 = inlined_call_operand.hbm [shape: f32[8,2048], index: 4, kind: output, shape index: {}]
  %s5 = sld [smem:[#allocation0]]
  $region65: #{tpu_custom_call.1} parent=0
    _
  %s7 = ssub.s32 1, %s5
  %s8 = scalar_select 0, %s7, %s5
  $region1: #{tpu_custom_call.1} parent=0
    #allocation2 [shape = 'u8[65536]{0}', space=vmem, size = 0x10000, scoped, tag = 'input window, operand 0']
    #allocation3 [shape = 's32[2]{0}', space=sflag, size = 0x8, scoped, tag = 'scoped memory for tpu_custom_call.1']
    #allocation4 [shape = 's32[2]{0}', space=sflag, size = 0x8, scoped, tag = 'scoped memory for tpu_custom_call.1']
    #allocation5 [shape = 'u8[4096]{0}', space=vmem, size = 0x1000, scoped, tag = 'input window, operand 1']
    #allocation6 [shape = 's32[2]{0}', space=sflag, size = 0x8, scoped, tag = 'scoped memory for tpu_custom_call.1']
    #allocation7 [shape = 'u8[98304]{0}', space=vmem, size = 0x18000, scoped, tag = 'input window, operand 2, single buffered']
    #allocation8 [shape = 'u8[32768]{0}', space=vmem, size = 0x8000, scoped, tag = 'input window, operand 3']
    #allocation9 [shape = 's32[2]{0}', space=sflag, size = 0x8, scoped, tag = 'scoped memory for tpu_custom_call.1']
    #allocation10 [shape = 'u8[65536]{0}', space=vmem, size = 0x10000, scoped, tag = 'output window, operand 0']
    %9 = vsyncpa [#allocation3], 0
    %s10 = scalar_lea.sflag [#allocation3], 1
    %11 = vsyncpa %s10, 0
    %12 = vsyncpa [#allocation6], 0
    %s13 = scalar_lea.sflag [#allocation6], 1
    %14 = vsyncpa %s13, 0
    %15 = vsyncpa [#allocation9], 0
    %s16 = scalar_lea.sflag [#allocation9], 1
    %17 = vsyncpa %s16, 0
    %18 = vsyncpa [#allocation4], 0
    %s19 = scalar_lea.sflag [#allocation4], 1
    %20 = vsyncpa %s19, 0
    loop: start=0, step=1, limit=4
    $region2: #{tpu_custom_call.1} parent=1 // loop_pre_header
      _
    $region3: #{tpu_custom_call.1} parent=1 // loop_header
      %s22 = sphi 0, %s26
      %p23 = scmp.ge.s32.totalorder %s22, 4
      %s29 = sphi 0, %s41
      %s30 = sphi 0, %s37
      %s31 = sphi 0, %s29
      %s32 = sphi 0, %s30
      %s33 = sphi 0, %s31
      %s34 = sphi 0, %s32
      %s46 = sphi 0, %s48
      %s49 = sphi 0, %s46
      %s50 = sphi 0, %s49
      %s66 = sphi 0, %s50
      %s78 = sphi 0, %s80
      %s81 = sphi 0, %s78
      %s82 = sphi 0, %s81
      %s98 = sphi 0, %s82
      %s102 = sphi 0, %s102
      %s104 = sphi 0, %s102
      %s105 = sphi 0, %s104
      %s119 = sphi 0, %s105
      %s127 = sphi 0, %s129
      %s130 = sphi 0, %s127
      %s131 = sphi 0, %s130
      %s147 = sphi 0, %s131
      %s155 = sphi 0, %s157
      %s158 = sphi 0, %s155
      %s159 = sphi 0, %s158
      %s175 = sphi 0, %s159
    $region4: #{tpu_custom_call.1} parent=1 // loop_header_branch
      %25 = sbr.rel (%p23) target = $region8
    $region5: #{tpu_custom_call.1} parent=1 // loop_body
      %s27 = ssub.s32 %s22, 1
      %s28 = ssub.s32 %s22, 2
      %s35 = sadd.s32 1, %s30
      %p36 = scmp.ge.s32.totalorder %s35, 2
      %s37 = scalar_select %p36, 0, %s35
      %s38 = sadd.s32 1, %s29
      %s39 = scalar_select %p36, %s38, %s29
      %p40 = scmp.ge.s32.totalorder %s39, 1
      %s41 = scalar_select %p40, 0, %s39
      %s42 = ssub.s32 %s29, %s41
      %s43 = ssub.s32 %s30, %s37
      %s44 = sor.u32 %s42, %s43
      %p45 = scmp.eq.s32.totalorder %s44, 0
      %s47 = sadd.s32 %s46, 1
      %s48 = scalar_select %p45, %s46, %s47
      %p51 = pneg %p45
      %p52 = scmp.eq.s32.totalorder %s22, 1
      %p53 = por %p51, %p52
      %p54 = scmp.ne.s32.totalorder %s46, %s49
      %p55 = scmp.eq.s32.totalorder %s22, 0
      %p56 = por %p54, %p55
      %p57 = scmp.ne.s32.totalorder %s46, %s49
      %p58 = scmp.eq.s32.totalorder %s27, 1
      %p59 = por %p57, %p58
      %p60 = scmp.ne.s32.totalorder %s49, %s50
      %p61 = scmp.eq.s32.totalorder %s27, 0
      %p62 = por %p60, %p61
      %p63 = scmp.ne.s32.totalorder %s49, %s50
      %p64 = scmp.eq.s32.totalorder %s28, 1
      %p65 = por %p63, %p64
      %p67 = scmp.ne.s32.totalorder %s50, %s66
      %p68 = scmp.eq.s32.totalorder %s28, 0
      %p69 = por %p67, %p68
      %s70 = sadd.s32 %s30, 1
      %s71 = smul.u32 %s70, 16
      %s72 = sadd.s32 %s37, 1
      %s73 = smul.u32 %s72, 16
      %s74 = ssub.s32 %s29, %s41
      %s75 = ssub.s32 %s71, %s73
      %s76 = sor.u32 %s74, %s75
      %p77 = scmp.eq.s32.totalorder %s76, 0
      %s79 = sadd.s32 %s78, 1
      %s80 = scalar_select %p77, %s78, %s79
      %p83 = pneg %p77
      %p84 = scmp.eq.s32.totalorder %s22, 1
      %p85 = por %p83, %p84
      %p86 = scmp.ne.s32.totalorder %s78, %s81
      %p87 = scmp.eq.s32.totalorder %s22, 0
      %p88 = por %p86, %p87
      %p89 = scmp.ne.s32.totalorder %s78, %s81
      %p90 = scmp.eq.s32.totalorder %s27, 1
      %p91 = por %p89, %p90
      %p92 = scmp.ne.s32.totalorder %s81, %s82
      %p93 = scmp.eq.s32.totalorder %s27, 0
      %p94 = por %p92, %p93
      %p95 = scmp.ne.s32.totalorder %s81, %s82
      %p96 = scmp.eq.s32.totalorder %s28, 1
      %p97 = por %p95, %p96
      %p99 = scmp.ne.s32.totalorder %s82, %s98
      %p100 = scmp.eq.s32.totalorder %s28, 0
      %p101 = por %p99, %p100
      %s103 = sadd.s32 %s102, 1
      %p106 = scmp.eq.s32.totalorder %s22, 1
      %p107 = scmp.ne.s32.totalorder %s102, %s104
      %p108 = scmp.eq.s32.totalorder %s22, 0
      %p109 = por %p107, %p108
      %p110 = scmp.ne.s32.totalorder %s102, %s104
      %p111 = scmp.eq.s32.totalorder %s27, 1
      %p112 = por %p110, %p111
      %p113 = scmp.ne.s32.totalorder %s104, %s105
      %p114 = scmp.eq.s32.totalorder %s27, 0
      %p115 = por %p113, %p114
      %p116 = scmp.ne.s32.totalorder %s104, %s105
      %p117 = scmp.eq.s32.totalorder %s28, 1
      %p118 = por %p116, %p117
      %p120 = scmp.ne.s32.totalorder %s105, %s119
      %p121 = scmp.eq.s32.totalorder %s28, 0
      %p122 = por %p120, %p121
      %s123 = ssub.s32 %s29, %s41
      %s124 = ssub.s32 %s30, %s37
      %s125 = sor.u32 %s123, %s124
      %p126 = scmp.eq.s32.totalorder %s125, 0
      %s128 = sadd.s32 %s127, 1
      %s129 = scalar_select %p126, %s127, %s128
      %p132 = pneg %p126
      %p133 = scmp.eq.s32.totalorder %s22, 1
      %p134 = por %p132, %p133
      %p135 = scmp.ne.s32.totalorder %s127, %s130
      %p136 = scmp.eq.s32.totalorder %s22, 0
      %p137 = por %p135, %p136
      %p138 = scmp.ne.s32.totalorder %s127, %s130
      %p139 = scmp.eq.s32.totalorder %s27, 1
      %p140 = por %p138, %p139
      %p141 = scmp.ne.s32.totalorder %s130, %s131
      %p142 = scmp.eq.s32.totalorder %s27, 0
      %p143 = por %p141, %p142
      %p144 = scmp.ne.s32.totalorder %s130, %s131
      %p145 = scmp.eq.s32.totalorder %s28, 1
      %p146 = por %p144, %p145
      %p148 = scmp.ne.s32.totalorder %s131, %s147
      %p149 = scmp.eq.s32.totalorder %s28, 0
      %p150 = por %p148, %p149
      %s151 = ssub.s32 %s29, %s41
      %s152 = ssub.s32 %s30, %s37
      %s153 = sor.u32 %s151, %s152
      %p154 = scmp.eq.s32.totalorder %s153, 0
      %s156 = sadd.s32 %s155, 1
      %s157 = scalar_select %p154, %s155, %s156
      %p160 = pneg %p154
      %p161 = scmp.eq.s32.totalorder %s22, 1
      %p162 = por %p160, %p161
      %p163 = scmp.ne.s32.totalorder %s155, %s158
      %p164 = scmp.eq.s32.totalorder %s22, 0
      %p165 = por %p163, %p164
      %p166 = scmp.ne.s32.totalorder %s155, %s158
      %p167 = scmp.eq.s32.totalorder %s27, 1
      %p168 = por %p166, %p167
      %p169 = scmp.ne.s32.totalorder %s158, %s159
      %p170 = scmp.eq.s32.totalorder %s27, 0
      %p171 = por %p169, %p170
      %p172 = scmp.ne.s32.totalorder %s158, %s159
      %p173 = scmp.eq.s32.totalorder %s28, 1
      %p174 = por %p172, %p173
      %p176 = scmp.ne.s32.totalorder %s159, %s175
      %p177 = scmp.eq.s32.totalorder %s28, 0
      %p178 = por %p176, %p177
      %p179 = scmp.le.s32.totalorder 1, %s22
      %p180 = scmp.lt.s32.totalorder %s22, 3
      %p181 = pnand %p179, %p180
      %p182 = pneg %p181
      // Predicated region
      $region9: #{tpu_custom_call.1} parent=5 // pred_check
        _
      $region10: #{tpu_custom_call.1} parent=5 // pred_check_branch
        %184 = sbr.rel (%p181) target = $region12
      $region11: #{tpu_custom_call.1} parent=5 // pred_region
        %s185 = ssub.s32 %s22, 1
        // Predicated region
        $region13: #{tpu_custom_call.1} parent=11 // pred_check
          %p186 = pneg %p115
        $region14: #{tpu_custom_call.1} parent=11 // pred_check_branch
          %188 = sbr.rel (%p186) target = $region16
        $region15: #{tpu_custom_call.1} parent=11 // pred_region
          %190 = vsyncadd [#allocation6], 0
          %s191 = sshll.u32 %s2, 4
          %s192 = int_to_ptr.hbm [resolvable:$true] %s191
          %s193 = sshll.u32 [#allocation7], 4
          %s194 = int_to_ptr.vmem [resolvable:$true] %s193
          %199 = dma.hbm_to_vmem [thread:$0]  %s192, 3072, %s194, [#allocation6], 64, 64, 4
        $region16: #{tpu_custom_call.1} parent=11 // pred_fallthru
          _
      $region12: #{tpu_custom_call.1} parent=5 // pred_fallthru
        _
      %p200 = scmp.lt.s32.totalorder %s22, 2
      // Predicated region
      $region17: #{tpu_custom_call.1} parent=5 // pred_check
        %p201 = pneg %p200
      $region18: #{tpu_custom_call.1} parent=5 // pred_check_branch
        %203 = sbr.rel (%p201) target = $region20
      $region19: #{tpu_custom_call.1} parent=5 // pred_region
        // Predicated region
        $region21: #{tpu_custom_call.1} parent=19 // pred_check
          %p204 = pneg %p56
        $region22: #{tpu_custom_call.1} parent=19 // pred_check_branch
          %206 = sbr.rel (%p204) target = $region24
        $region23: #{tpu_custom_call.1} parent=19 // pred_region
          %s207 = sand.u32 %s46, 1
          %s208 = scalar_lea.sflag [#allocation3], %s207
          %s209 = sand.u32 %s46, 1
          %s210 = smul.addr %s209, 64
          %s211 = scalar_lea.vmem [#allocation2], %s210
          %s212 = smul.u32 16, %s30
          %s213 = ssub.s32 33, %s212
          %p214 = scmp.lt.s32.totalorder %s213, 16
          %s215 = scalar_select %p214, %s213, 16
          %s216 = smul.u32 4, %s215
          %s217 = ssub.s32 64, %s216
          %s218 = sshll.u32 %s217, 4
          %219 = vsyncadd %s208, %s218
          %p220 = scmp.ne.s32.totalorder 0, %s216
          %s221 = smul.addr %s29, 33
          %s222 = sadd.s32 %s212, %s221
          %s223 = smul.addr %s222, 4
          %s224 = scalar_lea.hbm %s0, %s223
          %s225 = smul.u32 %s215, 4
          %s226 = sshll.u32 %s225, 4
          %s227 = sshll.u32 %s224, 4
          %s228 = int_to_ptr.hbm [resolvable:$true] %s227
          %s229 = sshll.u32 %s211, 4
          %s230 = int_to_ptr.vmem [resolvable:$true] %s229
          %232 = dma.hbm_to_vmem [thread:$0]  (%p220), %s228, %s226, %s230, %s208
        $region24: #{tpu_custom_call.1} parent=19 // pred_fallthru
          _
        // Predicated region
        $region25: #{tpu_custom_call.1} parent=19 // pred_check
          %p233 = pneg %p88
        $region26: #{tpu_custom_call.1} parent=19 // pred_check_branch
          %235 = sbr.rel (%p233) target = $region28
        $region27: #{tpu_custom_call.1} parent=19 // pred_region
          %s236 = sand.u32 %s22, 1
          %s237 = scalar_lea.sflag [#allocation6], %s236
          %s238 = sand.u32 %s78, 1
          %s239 = smul.addr %s238, 4
          %s240 = scalar_lea.vmem [#allocation5], %s239
          %s241 = sadd.s32 %s30, 1
          %s242 = smul.u32 %s241, 16
          %244 = vsyncadd %s237, 0
          %s245 = smul.addr %s29, 33
          %s246 = sadd.s32 %s242, %s245
          %s247 = smul.addr %s246, 4
          %s248 = scalar_lea.hbm %s1, %s247
          %s250 = sshll.u32 %s248, 4
          %s251 = int_to_ptr.hbm [resolvable:$true] %s250
          %s252 = sshll.u32 %s240, 4
          %s253 = int_to_ptr.vmem [resolvable:$true] %s252
          %255 = dma.hbm_to_vmem [thread:$0]  %s251, 64, %s253, %s237
        $region28: #{tpu_custom_call.1} parent=19 // pred_fallthru
          _
        // Predicated region
        $region29: #{tpu_custom_call.1} parent=19 // pred_check
          %p256 = pneg %p137
        $region30: #{tpu_custom_call.1} parent=19 // pred_check_branch
          %258 = sbr.rel (%p256) target = $region32
        $region31: #{tpu_custom_call.1} parent=19 // pred_region
          %s259 = sand.u32 %s127, 1
          %s260 = scalar_lea.sflag [#allocation9], %s259
          %s261 = sand.u32 %s127, 1
          %s262 = smul.addr %s261, 32
          %s263 = scalar_lea.vmem [#allocation8], %s262
          %s264 = smul.u32 8, %s30
          %266 = vsyncadd %s260, 0
          %s267 = smul.addr %s29, 16
          %s268 = sadd.s32 %s264, %s267
          %s269 = smul.addr %s268, 4
          %s270 = scalar_lea.hbm %s3, %s269
          %s272 = sshll.u32 %s270, 4
          %s273 = int_to_ptr.hbm [resolvable:$true] %s272
          %s274 = sshll.u32 %s263, 4
          %s275 = int_to_ptr.vmem [resolvable:$true] %s274
          %277 = dma.hbm_to_vmem [thread:$0]  %s273, 512, %s275, %s260
        $region32: #{tpu_custom_call.1} parent=19 // pred_fallthru
          _
      $region20: #{tpu_custom_call.1} parent=5 // pred_fallthru
        _
      %p278 = scmp.le.s32.totalorder 1, %s22
      %p279 = scmp.lt.s32.totalorder %s22, 3
      %p280 = pnand %p278, %p279
      %p281 = pneg %p280
      // Predicated region
      $region33: #{tpu_custom_call.1} parent=5 // pred_check
        _
      $region34: #{tpu_custom_call.1} parent=5 // pred_check_branch
        %283 = sbr.rel (%p280) target = $region36
      $region35: #{tpu_custom_call.1} parent=5 // pred_region
        %s284 = ssub.s32 %s22, 1
        %s285 = sand.u32 %s49, 1
        %s286 = scalar_lea.sflag [#allocation3], %s285
        %s287 = sand.u32 %s49, 1
        %s288 = smul.addr %s287, 64
        %s289 = scalar_lea.vmem [#allocation2], %s288
        // Predicated region
        $region37: #{tpu_custom_call.1} parent=35 // pred_check
          %p290 = pneg %p62
        $region38: #{tpu_custom_call.1} parent=35 // pred_check_branch
          %292 = sbr.rel (%p290) target = $region40
        $region39: #{tpu_custom_call.1} parent=35 // pred_region
          %294 = dma.done %s286, 1024
        $region40: #{tpu_custom_call.1} parent=35 // pred_fallthru
          _
        %s295 = sand.u32 %s27, 1
        %s296 = scalar_lea.sflag [#allocation6], %s295
        %s297 = sand.u32 %s81, 1
        %s298 = smul.addr %s297, 4
        %s299 = scalar_lea.vmem [#allocation5], %s298
        // Predicated region
        $region41: #{tpu_custom_call.1} parent=35 // pred_check
          %p300 = pneg %p94
        $region42: #{tpu_custom_call.1} parent=35 // pred_check_branch
          %302 = sbr.rel (%p300) target = $region44
        $region43: #{tpu_custom_call.1} parent=35 // pred_region
          %304 = dma.done %s296, 64
        $region44: #{tpu_custom_call.1} parent=35 // pred_fallthru
          _
        // Predicated region
        $region45: #{tpu_custom_call.1} parent=35 // pred_check
          %p305 = pneg %p115
        $region46: #{tpu_custom_call.1} parent=35 // pred_check_branch
          %307 = sbr.rel (%p305) target = $region48
        $region47: #{tpu_custom_call.1} parent=35 // pred_region
          %309 = dma.done [#allocation6], 3072
        $region48: #{tpu_custom_call.1} parent=35 // pred_fallthru
          _
        %s310 = sand.u32 %s130, 1
        %s311 = scalar_lea.sflag [#allocation9], %s310
        %s312 = sand.u32 %s130, 1
        %s313 = smul.addr %s312, 32
        %s314 = scalar_lea.vmem [#allocation8], %s313
        // Predicated region
        $region49: #{tpu_custom_call.1} parent=35 // pred_check
          %p315 = pneg %p143
        $region50: #{tpu_custom_call.1} parent=35 // pred_check_branch
          %317 = sbr.rel (%p315) target = $region52
        $region51: #{tpu_custom_call.1} parent=35 // pred_region
          %319 = dma.done %s311, 512
        $region52: #{tpu_custom_call.1} parent=35 // pred_fallthru
          _
        %s320 = sand.u32 %s49, 1
        %s321 = scalar_lea.sflag [#allocation3], %s320
        %s322 = sand.u32 %s49, 1
        %s323 = smul.addr %s322, 64
        %s324 = scalar_lea.vmem [#allocation2], %s323
        %p325 = pneg %p62
        %p326 = pneg %p59
        %s327 = sand.u32 %s27, 1
        %s328 = scalar_lea.sflag [#allocation6], %s327
        %s329 = sand.u32 %s81, 1
        %s330 = smul.addr %s329, 4
        %s331 = scalar_lea.vmem [#allocation5], %s330
        %p332 = pneg %p94
        %p333 = pneg %p91
        %p334 = pneg %p115
        %p335 = pneg %p112
        %s336 = sand.u32 %s130, 1
        %s337 = scalar_lea.sflag [#allocation9], %s336
        %s338 = sand.u32 %s130, 1
        %s339 = smul.addr %s338, 32
        %s340 = scalar_lea.vmem [#allocation8], %s339
        %p341 = pneg %p143
        %p342 = pneg %p140
        %p343 = pneg %p171
        %p344 = pneg %p168
        %s345 = sand.u32 %s158, 1
        %s346 = scalar_lea.sflag [#allocation4], %s345
        %s347 = sand.u32 %s158, 1
        %s348 = smul.addr %s347, 64
        %s349 = scalar_lea.vmem [#allocation10], %s348
        %s350 = smul.u32 16, %s32
        %s351 = ssub.s32 33, %s350
        %p352 = scmp.lt.s32.totalorder %s351, 16
        %s353 = scalar_select %p352, %s351, 16
        %s354 = smul.u32 4, %s353
        %s355 = sadd.s32 %s32, 1
        %s356 = smul.u32 %s355, 16
        %s357 = smul.u32 8, %s32
        %s358 = smul.u32 8, %s32
        %v359 = vld [vmem:[%s289] sm:$0xff]
        %v360 = vld [vmem:[%s289 + $0x8] sm:$0xf]
        %v361 = vld [vmem:[#allocation7] sm:$0xf]
        %v362 = vld [vmem:[#allocation7 + $0x4] sm:$0xf]
        %v363 = vld [vmem:[#allocation7 + $0x8] sm:$0xf]
        %v364 = vld [vmem:[#allocation7 + $0xc] sm:$0xf]
        %v365 = vld [vmem:[#allocation7 + $0x10] sm:$0xf]
        %v366 = vld [vmem:[#allocation7 + $0x14] sm:$0xf]
        %v367 = vld [vmem:[#allocation7 + $0x18] sm:$0xf]
        %v368 = vld [vmem:[#allocation7 + $0x1c] sm:$0xf]
        %v369 = vld [vmem:[#allocation7 + $0x20] sm:$0xf]
        %v370 = vld [vmem:[#allocation7 + $0x24] sm:$0xf]
        %v371 = vld [vmem:[#allocation7 + $0x28] sm:$0xf]
        %v372 = vld [vmem:[#allocation7 + $0x2c] sm:$0xf]
        %v373 = vld [vmem:[#allocation7 + $0x30] sm:$0xf]
        %v374 = vld [vmem:[#allocation7 + $0x34] sm:$0xf]
        %v375 = vld [vmem:[#allocation7 + $0x38] sm:$0xf]
        %v376 = vld [vmem:[#allocation7 + $0x3c] sm:$0xf]
        %v377 = vld [vmem:[#allocation7 + $0x40] sm:$0xf]
        %v378 = vld [vmem:[#allocation7 + $0x44] sm:$0xf]
        %v379 = vld [vmem:[#allocation7 + $0x48] sm:$0xf]
        %v380 = vld [vmem:[#allocation7 + $0x4c] sm:$0xf]
        %v381 = vld [vmem:[#allocation7 + $0x50] sm:$0xf]
        %v382 = vld [vmem:[#allocation7 + $0x54] sm:$0xf]
        %v383 = vld [vmem:[#allocation7 + $0x58] sm:$0xf]
        %v384 = vld [vmem:[#allocation7 + $0x5c] sm:$0xf]
        %v385 = vld [vmem:[#allocation7 + $0x60] sm:$0xf]
        %v386 = vld [vmem:[#allocation7 + $0x64] sm:$0xf]
        %v387 = vld [vmem:[#allocation7 + $0x68] sm:$0xf]
        %v388 = vld [vmem:[#allocation7 + $0x6c] sm:$0xf]
        %v389 = vld [vmem:[#allocation7 + $0x70] sm:$0xf]
        %v390 = vld [vmem:[#allocation7 + $0x74] sm:$0xf]
        %v391 = vld [vmem:[#allocation7 + $0x78] sm:$0xf]
        %v392 = vld [vmem:[#allocation7 + $0x7c] sm:$0xf]
        %v393 = vld [vmem:[#allocation7 + $0x80] sm:$0xf]
        %v394 = vld [vmem:[#allocation7 + $0x84] sm:$0xf]
        %v395 = vld [vmem:[#allocation7 + $0x88] sm:$0xf]
        %v396 = vld [vmem:[#allocation7 + $0x8c] sm:$0xf]
        %v397 = vld [vmem:[#allocation7 + $0x90] sm:$0xf]
        %v398 = vld [vmem:[#allocation7 + $0x94] sm:$0xf]
        %v399 = vld [vmem:[#allocation7 + $0x98] sm:$0xf]
        %v400 = vld [vmem:[#allocation7 + $0x9c] sm:$0xf]
        %v401 = vld [vmem:[#allocation7 + $0xa0] sm:$0xf]
        %v402 = vld [vmem:[#allocation7 + $0xa4] sm:$0xf]
        %v403 = vld [vmem:[#allocation7 + $0xa8] sm:$0xf]
        %v404 = vld [vmem:[#allocation7 + $0xac] sm:$0xf]
        %v405 = vld [vmem:[#allocation7 + $0xb0] sm:$0xf]
        %v406 = vld [vmem:[#allocation7 + $0xb4] sm:$0xf]
        %v407 = vld [vmem:[#allocation7 + $0xb8] sm:$0xf]
        %v408 = vld [vmem:[#allocation7 + $0xbc] sm:$0xf]
        %v409 = vld [vmem:[%s314] sm:$0xf]
        %v410 = vunpack.c.l.bf16 %v409
        %v413 = vunpack.c.l.b16 %v359
        %v414 = vunpack.c.h.b16 %v359
        %v415 = vunpack.c.l.b16 %v360
        %v416 = vpack.c.b16 %v413, %v413
        %v417 = vpack.c.b16 %v414, %v414
        %v418 = vpack.c.b16 %v415, %v415
        %v470 = vunpack.c.l.b16 %v361
        %v471 = vunpack.c.l.b16 %v362
        %v472 = vunpack.c.l.b16 %v363
        %v473 = vunpack.c.l.b16 %v364
        %v474 = vunpack.c.l.b16 %v365
        %v475 = vunpack.c.l.b16 %v366
        %v476 = vunpack.c.l.b16 %v367
        %v477 = vunpack.c.l.b16 %v368
        %v478 = vunpack.c.l.b16 %v369
        %v479 = vunpack.c.l.b16 %v370
        %v480 = vunpack.c.l.b16 %v371
        %v481 = vunpack.c.l.b16 %v372
        %v482 = vunpack.c.l.b16 %v373
        %v483 = vunpack.c.l.b16 %v374
        %v484 = vunpack.c.l.b16 %v375
        %v485 = vunpack.c.l.b16 %v376
        %v486 = vunpack.c.l.b16 %v377
        %v487 = vunpack.c.l.b16 %v378
        %v488 = vunpack.c.l.b16 %v379
        %v489 = vunpack.c.l.b16 %v380
        %v490 = vunpack.c.l.b16 %v381
        %v491 = vunpack.c.l.b16 %v382
        %v492 = vunpack.c.l.b16 %v383
        %v493 = vunpack.c.l.b16 %v384
        %v494 = vunpack.c.l.b16 %v385
        %v495 = vunpack.c.l.b16 %v386
        %v496 = vunpack.c.l.b16 %v387
        %v497 = vunpack.c.l.b16 %v388
        %v498 = vunpack.c.l.b16 %v389
        %v499 = vunpack.c.l.b16 %v390
        %v500 = vunpack.c.l.b16 %v391
        %v501 = vunpack.c.l.b16 %v392
        %v502 = vunpack.c.l.b16 %v393
        %v503 = vunpack.c.l.b16 %v394
        %v504 = vunpack.c.l.b16 %v395
        %v505 = vunpack.c.l.b16 %v396
        %v506 = vunpack.c.l.b16 %v397
        %v507 = vunpack.c.l.b16 %v398
        %v508 = vunpack.c.l.b16 %v399
        %v509 = vunpack.c.l.b16 %v400
        %v510 = vunpack.c.l.b16 %v401
        %v511 = vunpack.c.l.b16 %v402
        %v512 = vunpack.c.l.b16 %v403
        %v513 = vunpack.c.l.b16 %v404
        %v514 = vunpack.c.l.b16 %v405
        %v515 = vunpack.c.l.b16 %v406
        %v516 = vunpack.c.l.b16 %v407
        %v517 = vunpack.c.l.b16 %v408
        %v518 = vpack.c.b16 %v471, %v470
        %v519 = vpack.c.b16 %v473, %v472
        %v520 = vpack.c.b16 %v475, %v474
        %v521 = vpack.c.b16 %v477, %v476
        %v522 = vpack.c.b16 %v479, %v478
        %v523 = vpack.c.b16 %v481, %v480
        %v524 = vpack.c.b16 %v483, %v482
        %v525 = vpack.c.b16 %v485, %v484
        %v526 = vpack.c.b16 %v487, %v486
        %v527 = vpack.c.b16 %v489, %v488
        %v528 = vpack.c.b16 %v491, %v490
        %v529 = vpack.c.b16 %v493, %v492
        %v530 = vpack.c.b16 %v495, %v494
        %v531 = vpack.c.b16 %v497, %v496
        %v532 = vpack.c.b16 %v499, %v498
        %v533 = vpack.c.b16 %v501, %v500
        %v534 = vpack.c.b16 %v503, %v502
        %v535 = vpack.c.b16 %v505, %v504
        %v536 = vpack.c.b16 %v507, %v506
        %v537 = vpack.c.b16 %v509, %v508
        %v538 = vpack.c.b16 %v511, %v510
        %v539 = vpack.c.b16 %v513, %v512
        %v540 = vpack.c.b16 %v515, %v514
        %v541 = vpack.c.b16 %v517, %v516
        %566 = vmatpush.bf16.msra.mxu0 %v525
        %567 = vmatpush.bf16.msra.mxu0 %v524
        %568 = vmatpush.bf16.msra.mxu0 %v523
        %569 = vmatpush.bf16.msra.mxu0 %v522
        %570 = vmatpush.bf16.msra.mxu0 %v521
        %571 = vmatpush.bf16.msra.mxu0 %v520
        %572 = vmatpush.bf16.msra.mxu0 %v519
        %573 = vmatpush.bf16.msra.mxu0 %v518
        %574 = vmatmul.bf16.gmra.mxu0 %v416
        %v575 = vpop.f32.mrf.mxu0
        %v576 = vadd.f32 %v410, %v575
        %v577 = vpop.f32.mrf.mxu0
        %578 = vdwg.mxu0
        %579 = vmatpush.bf16.msra.mxu0 %v533
        %580 = vmatpush.bf16.msra.mxu0 %v532
        %581 = vmatpush.bf16.msra.mxu0 %v531
        %582 = vmatpush.bf16.msra.mxu0 %v530
        %583 = vmatpush.bf16.msra.mxu0 %v529
        %584 = vmatpush.bf16.msra.mxu0 %v528
        %585 = vmatpush.bf16.msra.mxu0 %v527
        %586 = vmatpush.bf16.msra.mxu0 %v526
        %587 = vmatmul.bf16.gmra.mxu0 %v417
        %v588 = vpop.f32.mrf.mxu0
        %v589 = vadd.f32 %v576, %v588
        %v590 = vpop.f32.mrf.mxu0
        %591 = vdwg.mxu0
        %592 = vmatpush.bf16.msra.mxu0 %v541
        %593 = vmatpush.bf16.msra.mxu0 %v540
        %594 = vmatpush.bf16.msra.mxu0 %v539
        %595 = vmatpush.bf16.msra.mxu0 %v538
        %596 = vmatpush.bf16.msra.mxu0 %v537
        %597 = vmatpush.bf16.msra.mxu0 %v536
        %598 = vmatpush.bf16.msra.mxu0 %v535
        %599 = vmatpush.bf16.msra.mxu0 %v534
        %600 = vmatmul.bf16.gmra.mxu0 %v418
        %v601 = vpop.f32.mrf.mxu0
        %v602 = vadd.f32 %v589, %v601
        %v603 = vpop.f32.mrf.mxu0
        %604 = vdwg.mxu0
        %605 = vst [vmem:[%s349] sm:$0xff] %v602
        %v606 = vld [vmem:[%s289 + $0x8] sm:$0xff]
        %v607 = vld [vmem:[%s289 + $0x10] sm:$0xf]
        %v608 = vld [vmem:[#allocation7] sm:$0xf]
        %v609 = vld [vmem:[#allocation7 + $0x4] sm:$0xf]
        %v610 = vld [vmem:[#allocation7 + $0x8] sm:$0xf]
        %v611 = vld [vmem:[#allocation7 + $0xc] sm:$0xf]
        %v612 = vld [vmem:[#allocation7 + $0x10] sm:$0xf]
        %v613 = vld [vmem:[#allocation7 + $0x14] sm:$0xf]
        %v614 = vld [vmem:[#allocation7 + $0x18] sm:$0xf]
        %v615 = vld [vmem:[#allocation7 + $0x1c] sm:$0xf]
        %v616 = vld [vmem:[#allocation7 + $0x20] sm:$0xf]
        %v617 = vld [vmem:[#allocation7 + $0x24] sm:$0xf]
        %v618 = vld [vmem:[#allocation7 + $0x28] sm:$0xf]
        %v619 = vld [vmem:[#allocation7 + $0x2c] sm:$0xf]
        %v620 = vld [vmem:[#allocation7 + $0x30] sm:$0xf]
        %v621 = vld [vmem:[#allocation7 + $0x34] sm:$0xf]
        %v622 = vld [vmem:[#allocation7 + $0x38] sm:$0xf]
        %v623 = vld [vmem:[#allocation7 + $0x3c] sm:$0xf]
        %v624 = vld [vmem:[#allocation7 + $0x40] sm:$0xf]
        %v625 = vld [vmem:[#allocation7 + $0x44] sm:$0xf]
        %v626 = vld [vmem:[#allocation7 + $0x48] sm:$0xf]
        %v627 = vld [vmem:[#allocation7 + $0x4c] sm:$0xf]
        %v628 = vld [vmem:[#allocation7 + $0x50] sm:$0xf]
        %v629 = vld [vmem:[#allocation7 + $0x54] sm:$0xf]
        %v630 = vld [vmem:[#allocation7 + $0x58] sm:$0xf]
        %v631 = vld [vmem:[#allocation7 + $0x5c] sm:$0xf]
        %v632 = vld [vmem:[#allocation7 + $0x60] sm:$0xf]
        %v633 = vld [vmem:[#allocation7 + $0x64] sm:$0xf]
        %v634 = vld [vmem:[#allocation7 + $0x68] sm:$0xf]
        %v635 = vld [vmem:[#allocation7 + $0x6c] sm:$0xf]
        %v636 = vld [vmem:[#allocation7 + $0x70] sm:$0xf]
        %v637 = vld [vmem:[#allocation7 + $0x74] sm:$0xf]
        %v638 = vld [vmem:[#allocation7 + $0x78] sm:$0xf]
        %v639 = vld [vmem:[#allocation7 + $0x7c] sm:$0xf]
        %v640 = vld [vmem:[#allocation7 + $0x80] sm:$0xf]
        %v641 = vld [vmem:[#allocation7 + $0x84] sm:$0xf]
        %v642 = vld [vmem:[#allocation7 + $0x88] sm:$0xf]
        %v643 = vld [vmem:[#allocation7 + $0x8c] sm:$0xf]
        %v644 = vld [vmem:[#allocation7 + $0x90] sm:$0xf]
        %v645 = vld [vmem:[#allocation7 + $0x94] sm:$0xf]
        %v646 = vld [vmem:[#allocation7 + $0x98] sm:$0xf]
        %v647 = vld [vmem:[#allocation7 + $0x9c] sm:$0xf]
        %v648 = vld [vmem:[#allocation7 + $0xa0] sm:$0xf]
        %v649 = vld [vmem:[#allocation7 + $0xa4] sm:$0xf]
        %v650 = vld [vmem:[#allocation7 + $0xa8] sm:$0xf]
        %v651 = vld [vmem:[#allocation7 + $0xac] sm:$0xf]
        %v652 = vld [vmem:[#allocation7 + $0xb0] sm:$0xf]
        %v653 = vld [vmem:[#allocation7 + $0xb4] sm:$0xf]
        %v654 = vld [vmem:[#allocation7 + $0xb8] sm:$0xf]
        %v655 = vld [vmem:[#allocation7 + $0xbc] sm:$0xf]
        %v656 = vld [vmem:[%s314 + $0x4] sm:$0xf]
        %v657 = vunpack.c.l.bf16 %v656
        %v660 = vunpack.c.l.b16 %v606
        %v661 = vunpack.c.h.b16 %v606
        %v662 = vunpack.c.l.b16 %v607
        %v663 = vpack.c.b16 %v660, %v660
        %v664 = vpack.c.b16 %v661, %v661
        %v665 = vpack.c.b16 %v662, %v662
        %v717 = vunpack.c.l.b16 %v608
        %v718 = vunpack.c.l.b16 %v609
        %v719 = vunpack.c.l.b16 %v610
        %v720 = vunpack.c.l.b16 %v611
        %v721 = vunpack.c.l.b16 %v612
        %v722 = vunpack.c.l.b16 %v613
        %v723 = vunpack.c.l.b16 %v614
        %v724 = vunpack.c.l.b16 %v615
        %v725 = vunpack.c.l.b16 %v616
        %v726 = vunpack.c.l.b16 %v617
        %v727 = vunpack.c.l.b16 %v618
        %v728 = vunpack.c.l.b16 %v619
        %v729 = vunpack.c.l.b16 %v620
        %v730 = vunpack.c.l.b16 %v621
        %v731 = vunpack.c.l.b16 %v622
        %v732 = vunpack.c.l.b16 %v623
        %v733 = vunpack.c.l.b16 %v624
        %v734 = vunpack.c.l.b16 %v625
        %v735 = vunpack.c.l.b16 %v626
        %v736 = vunpack.c.l.b16 %v627
        %v737 = vunpack.c.l.b16 %v628
        %v738 = vunpack.c.l.b16 %v629
        %v739 = vunpack.c.l.b16 %v630
        %v740 = vunpack.c.l.b16 %v631
        %v741 = vunpack.c.l.b16 %v632
        %v742 = vunpack.c.l.b16 %v633
        %v743 = vunpack.c.l.b16 %v634
        %v744 = vunpack.c.l.b16 %v635
        %v745 = vunpack.c.l.b16 %v636
        %v746 = vunpack.c.l.b16 %v637
        %v747 = vunpack.c.l.b16 %v638
        %v748 = vunpack.c.l.b16 %v639
        %v749 = vunpack.c.l.b16 %v640
        %v750 = vunpack.c.l.b16 %v641
        %v751 = vunpack.c.l.b16 %v642
        %v752 = vunpack.c.l.b16 %v643
        %v753 = vunpack.c.l.b16 %v644
        %v754 = vunpack.c.l.b16 %v645
        %v755 = vunpack.c.l.b16 %v646
        %v756 = vunpack.c.l.b16 %v647
        %v757 = vunpack.c.l.b16 %v648
        %v758 = vunpack.c.l.b16 %v649
        %v759 = vunpack.c.l.b16 %v650
        %v760 = vunpack.c.l.b16 %v651
        %v761 = vunpack.c.l.b16 %v652
        %v762 = vunpack.c.l.b16 %v653
        %v763 = vunpack.c.l.b16 %v654
        %v764 = vunpack.c.l.b16 %v655
        %v765 = vpack.c.b16 %v718, %v717
        %v766 = vpack.c.b16 %v720, %v719
        %v767 = vpack.c.b16 %v722, %v721
        %v768 = vpack.c.b16 %v724, %v723
        %v769 = vpack.c.b16 %v726, %v725
        %v770 = vpack.c.b16 %v728, %v727
        %v771 = vpack.c.b16 %v730, %v729
        %v772 = vpack.c.b16 %v732, %v731
        %v773 = vpack.c.b16 %v734, %v733
        %v774 = vpack.c.b16 %v736, %v735
        %v775 = vpack.c.b16 %v738, %v737
        %v776 = vpack.c.b16 %v740, %v739
        %v777 = vpack.c.b16 %v742, %v741
        %v778 = vpack.c.b16 %v744, %v743
        %v779 = vpack.c.b16 %v746, %v745
        %v780 = vpack.c.b16 %v748, %v747
        %v781 = vpack.c.b16 %v750, %v749
        %v782 = vpack.c.b16 %v752, %v751
        %v783 = vpack.c.b16 %v754, %v753
        %v784 = vpack.c.b16 %v756, %v755
        %v785 = vpack.c.b16 %v758, %v757
        %v786 = vpack.c.b16 %v760, %v759
        %v787 = vpack.c.b16 %v762, %v761
        %v788 = vpack.c.b16 %v764, %v763
        %813 = vmatpush.bf16.msra.mxu0 %v772
        %814 = vmatpush.bf16.msra.mxu0 %v771
        %815 = vmatpush.bf16.msra.mxu0 %v770
        %816 = vmatpush.bf16.msra.mxu0 %v769
        %817 = vmatpush.bf16.msra.mxu0 %v768
        %818 = vmatpush.bf16.msra.mxu0 %v767
        %819 = vmatpush.bf16.msra.mxu0 %v766
        %820 = vmatpush.bf16.msra.mxu0 %v765
        %821 = vmatmul.bf16.gmra.mxu0 %v663
        %v822 = vpop.f32.mrf.mxu0
        %v823 = vadd.f32 %v657, %v822
        %v824 = vpop.f32.mrf.mxu0
        %825 = vdwg.mxu0
        %826 = vmatpush.bf16.msra.mxu0 %v780
        %827 = vmatpush.bf16.msra.mxu0 %v779
        %828 = vmatpush.bf16.msra.mxu0 %v778
        %829 = vmatpush.bf16.msra.mxu0 %v777
        %830 = vmatpush.bf16.msra.mxu0 %v776
        %831 = vmatpush.bf16.msra.mxu0 %v775
        %832 = vmatpush.bf16.msra.mxu0 %v774
        %833 = vmatpush.bf16.msra.mxu0 %v773
        %834 = vmatmul.bf16.gmra.mxu0 %v664
        %v835 = vpop.f32.mrf.mxu0
        %v836 = vadd.f32 %v823, %v835
        %v837 = vpop.f32.mrf.mxu0
        %838 = vdwg.mxu0
        %839 = vmatpush.bf16.msra.mxu0 %v788
        %840 = vmatpush.bf16.msra.mxu0 %v787
        %841 = vmatpush.bf16.msra.mxu0 %v786
        %842 = vmatpush.bf16.msra.mxu0 %v785
        %843 = vmatpush.bf16.msra.mxu0 %v784
        %844 = vmatpush.bf16.msra.mxu0 %v783
        %845 = vmatpush.bf16.msra.mxu0 %v782
        %846 = vmatpush.bf16.msra.mxu0 %v781
        %847 = vmatmul.bf16.gmra.mxu0 %v665
        %v848 = vpop.f32.mrf.mxu0
        %v849 = vadd.f32 %v836, %v848
        %v850 = vpop.f32.mrf.mxu0
        %851 = vdwg.mxu0
        %852 = vst [vmem:[%s349 + $0x8] sm:$0xff] %v849
        %v853 = vld [vmem:[%s289 + $0x10] sm:$0xff]
        %v854 = vld [vmem:[%s289 + $0x18] sm:$0xf]
        %v855 = vld [vmem:[#allocation7] sm:$0xf]
        %v856 = vld [vmem:[#allocation7 + $0x4] sm:$0xf]
        %v857 = vld [vmem:[#allocation7 + $0x8] sm:$0xf]
        %v858 = vld [vmem:[#allocation7 + $0xc] sm:$0xf]
        %v859 = vld [vmem:[#allocation7 + $0x10] sm:$0xf]
        %v860 = vld [vmem:[#allocation7 + $0x14] sm:$0xf]
        %v861 = vld [vmem:[#allocation7 + $0x18] sm:$0xf]
        %v862 = vld [vmem:[#allocation7 + $0x1c] sm:$0xf]
        %v863 = vld [vmem:[#allocation7 + $0x20] sm:$0xf]
        %v864 = vld [vmem:[#allocation7 + $0x24] sm:$0xf]
        %v865 = vld [vmem:[#allocation7 + $0x28] sm:$0xf]
        %v866 = vld [vmem:[#allocation7 + $0x2c] sm:$0xf]
        %v867 = vld [vmem:[#allocation7 + $0x30] sm:$0xf]
        %v868 = vld [vmem:[#allocation7 + $0x34] sm:$0xf]
        %v869 = vld [vmem:[#allocation7 + $0x38] sm:$0xf]
        %v870 = vld [vmem:[#allocation7 + $0x3c] sm:$0xf]
        %v871 = vld [vmem:[#allocation7 + $0x40] sm:$0xf]
        %v872 = vld [vmem:[#allocation7 + $0x44] sm:$0xf]
        %v873 = vld [vmem:[#allocation7 + $0x48] sm:$0xf]
        %v874 = vld [vmem:[#allocation7 + $0x4c] sm:$0xf]
        %v875 = vld [vmem:[#allocation7 + $0x50] sm:$0xf]
        %v876 = vld [vmem:[#allocation7 + $0x54] sm:$0xf]
        %v877 = vld [vmem:[#allocation7 + $0x58] sm:$0xf]
        %v878 = vld [vmem:[#allocation7 + $0x5c] sm:$0xf]
        %v879 = vld [vmem:[#allocation7 + $0x60] sm:$0xf]
        %v880 = vld [vmem:[#allocation7 + $0x64] sm:$0xf]
        %v881 = vld [vmem:[#allocation7 + $0x68] sm:$0xf]
        %v882 = vld [vmem:[#allocation7 + $0x6c] sm:$0xf]
        %v883 = vld [vmem:[#allocation7 + $0x70] sm:$0xf]
        %v884 = vld [vmem:[#allocation7 + $0x74] sm:$0xf]
        %v885 = vld [vmem:[#allocation7 + $0x78] sm:$0xf]
        %v886 = vld [vmem:[#allocation7 + $0x7c] sm:$0xf]
        %v887 = vld [vmem:[#allocation7 + $0x80] sm:$0xf]
        %v888 = vld [vmem:[#allocation7 + $0x84] sm:$0xf]
        %v889 = vld [vmem:[#allocation7 + $0x88] sm:$0xf]
        %v890 = vld [vmem:[#allocation7 + $0x8c] sm:$0xf]
        %v891 = vld [vmem:[#allocation7 + $0x90] sm:$0xf]
        %v892 = vld [vmem:[#allocation7 + $0x94] sm:$0xf]
        %v893 = vld [vmem:[#allocation7 + $0x98] sm:$0xf]
        %v894 = vld [vmem:[#allocation7 + $0x9c] sm:$0xf]
        %v895 = vld [vmem:[#allocation7 + $0xa0] sm:$0xf]
        %v896 = vld [vmem:[#allocation7 + $0xa4] sm:$0xf]
        %v897 = vld [vmem:[#allocation7 + $0xa8] sm:$0xf]
        %v898 = vld [vmem:[#allocation7 + $0xac] sm:$0xf]
        %v899 = vld [vmem:[#allocation7 + $0xb0] sm:$0xf]
        %v900 = vld [vmem:[#allocation7 + $0xb4] sm:$0xf]
        %v901 = vld [vmem:[#allocation7 + $0xb8] sm:$0xf]
        %v902 = vld [vmem:[#allocation7 + $0xbc] sm:$0xf]
        %v903 = vld [vmem:[%s314 + $0x8] sm:$0xf]
        %v904 = vunpack.c.l.bf16 %v903
        %v907 = vunpack.c.l.b16 %v853
        %v908 = vunpack.c.h.b16 %v853
        %v909 = vunpack.c.l.b16 %v854
        %v910 = vpack.c.b16 %v907, %v907
        %v911 = vpack.c.b16 %v908, %v908
        %v912 = vpack.c.b16 %v909, %v909
        %v964 = vunpack.c.l.b16 %v855
        %v965 = vunpack.c.l.b16 %v856
        %v966 = vunpack.c.l.b16 %v857
        %v967 = vunpack.c.l.b16 %v858
        %v968 = vunpack.c.l.b16 %v859
        %v969 = vunpack.c.l.b16 %v860
        %v970 = vunpack.c.l.b16 %v861
        %v971 = vunpack.c.l.b16 %v862
        %v972 = vunpack.c.l.b16 %v863
        %v973 = vunpack.c.l.b16 %v864
        %v974 = vunpack.c.l.b16 %v865
        %v975 = vunpack.c.l.b16 %v866
        %v976 = vunpack.c.l.b16 %v867
        %v977 = vunpack.c.l.b16 %v868
        %v978 = vunpack.c.l.b16 %v869
        %v979 = vunpack.c.l.b16 %v870
        %v980 = vunpack.c.l.b16 %v871
        %v981 = vunpack.c.l.b16 %v872
        %v982 = vunpack.c.l.b16 %v873
        %v983 = vunpack.c.l.b16 %v874
        %v984 = vunpack.c.l.b16 %v875
        %v985 = vunpack.c.l.b16 %v876
        %v986 = vunpack.c.l.b16 %v877
        %v987 = vunpack.c.l.b16 %v878
        %v988 = vunpack.c.l.b16 %v879
        %v989 = vunpack.c.l.b16 %v880
        %v990 = vunpack.c.l.b16 %v881
        %v991 = vunpack.c.l.b16 %v882
        %v992 = vunpack.c.l.b16 %v883
        %v993 = vunpack.c.l.b16 %v884
        %v994 = vunpack.c.l.b16 %v885
        %v995 = vunpack.c.l.b16 %v886
        %v996 = vunpack.c.l.b16 %v887
        %v997 = vunpack.c.l.b16 %v888
        %v998 = vunpack.c.l.b16 %v889
        %v999 = vunpack.c.l.b16 %v890
        %v1000 = vunpack.c.l.b16 %v891
        %v1001 = vunpack.c.l.b16 %v892
        %v1002 = vunpack.c.l.b16 %v893
        %v1003 = vunpack.c.l.b16 %v894
        %v1004 = vunpack.c.l.b16 %v895
        %v1005 = vunpack.c.l.b16 %v896
        %v1006 = vunpack.c.l.b16 %v897
        %v1007 = vunpack.c.l.b16 %v898
        %v1008 = vunpack.c.l.b16 %v899
        %v1009 = vunpack.c.l.b16 %v900
        %v1010 = vunpack.c.l.b16 %v901
        %v1011 = vunpack.c.l.b16 %v902
        %v1012 = vpack.c.b16 %v965, %v964
        %v1013 = vpack.c.b16 %v967, %v966
        %v1014 = vpack.c.b16 %v969, %v968
        %v1015 = vpack.c.b16 %v971, %v970
        %v1016 = vpack.c.b16 %v973, %v972
        %v1017 = vpack.c.b16 %v975, %v974
        %v1018 = vpack.c.b16 %v977, %v976
        %v1019 = vpack.c.b16 %v979, %v978
        %v1020 = vpack.c.b16 %v981, %v980
        %v1021 = vpack.c.b16 %v983, %v982
        %v1022 = vpack.c.b16 %v985, %v984
        %v1023 = vpack.c.b16 %v987, %v986
        %v1024 = vpack.c.b16 %v989, %v988
        %v1025 = vpack.c.b16 %v991, %v990
        %v1026 = vpack.c.b16 %v993, %v992
        %v1027 = vpack.c.b16 %v995, %v994
        %v1028 = vpack.c.b16 %v997, %v996
        %v1029 = vpack.c.b16 %v999, %v998
        %v1030 = vpack.c.b16 %v1001, %v1000
        %v1031 = vpack.c.b16 %v1003, %v1002
        %v1032 = vpack.c.b16 %v1005, %v1004
        %v1033 = vpack.c.b16 %v1007, %v1006
        %v1034 = vpack.c.b16 %v1009, %v1008
        %v1035 = vpack.c.b16 %v1011, %v1010
        %1060 = vmatpush.bf16.msra.mxu0 %v1019
        %1061 = vmatpush.bf16.msra.mxu0 %v1018
        %1062 = vmatpush.bf16.msra.mxu0 %v1017
        %1063 = vmatpush.bf16.msra.mxu0 %v1016
        %1064 = vmatpush.bf16.msra.mxu0 %v1015
        %1065 = vmatpush.bf16.msra.mxu0 %v1014
        %1066 = vmatpush.bf16.msra.mxu0 %v1013
        %1067 = vmatpush.bf16.msra.mxu0 %v1012
        %1068 = vmatmul.bf16.gmra.mxu0 %v910
        %v1069 = vpop.f32.mrf.mxu0
        %v1070 = vadd.f32 %v904, %v1069
        %v1071 = vpop.f32.mrf.mxu0
        %1072 = vdwg.mxu0
        %1073 = vmatpush.bf16.msra.mxu0 %v1027
        %1074 = vmatpush.bf16.msra.mxu0 %v1026
        %1075 = vmatpush.bf16.msra.mxu0 %v1025
        %1076 = vmatpush.bf16.msra.mxu0 %v1024
        %1077 = vmatpush.bf16.msra.mxu0 %v1023
        %1078 = vmatpush.bf16.msra.mxu0 %v1022
        %1079 = vmatpush.bf16.msra.mxu0 %v1021
        %1080 = vmatpush.bf16.msra.mxu0 %v1020
        %1081 = vmatmul.bf16.gmra.mxu0 %v911
        %v1082 = vpop.f32.mrf.mxu0
        %v1083 = vadd.f32 %v1070, %v1082
        %v1084 = vpop.f32.mrf.mxu0
        %1085 = vdwg.mxu0
        %1086 = vmatpush.bf16.msra.mxu0 %v1035
        %1087 = vmatpush.bf16.msra.mxu0 %v1034
        %1088 = vmatpush.bf16.msra.mxu0 %v1033
        %1089 = vmatpush.bf16.msra.mxu0 %v1032
        %1090 = vmatpush.bf16.msra.mxu0 %v1031
        %1091 = vmatpush.bf16.msra.mxu0 %v1030
        %1092 = vmatpush.bf16.msra.mxu0 %v1029
        %1093 = vmatpush.bf16.msra.mxu0 %v1028
        %1094 = vmatmul.bf16.gmra.mxu0 %v912
        %v1095 = vpop.f32.mrf.mxu0
        %v1096 = vadd.f32 %v1083, %v1095
        %v1097 = vpop.f32.mrf.mxu0
        %1098 = vdwg.mxu0
        %1099 = vst [vmem:[%s349 + $0x10] sm:$0xff] %v1096
        %v1100 = vld [vmem:[%s289 + $0x18] sm:$0xff]
        %v1101 = vld [vmem:[%s289 + $0x20] sm:$0xf]
        %v1102 = vld [vmem:[#allocation7] sm:$0xf]
        %v1103 = vld [vmem:[#allocation7 + $0x4] sm:$0xf]
        %v1104 = vld [vmem:[#allocation7 + $0x8] sm:$0xf]
        %v1105 = vld [vmem:[#allocation7 + $0xc] sm:$0xf]
        %v1106 = vld [vmem:[#allocation7 + $0x10] sm:$0xf]
        %v1107 = vld [vmem:[#allocation7 + $0x14] sm:$0xf]
        %v1108 = vld [vmem:[#allocation7 + $0x18] sm:$0xf]
        %v1109 = vld [vmem:[#allocation7 + $0x1c] sm:$0xf]
        %v1110 = vld [vmem:[#allocation7 + $0x20] sm:$0xf]
        %v1111 = vld [vmem:[#allocation7 + $0x24] sm:$0xf]
        %v1112 = vld [vmem:[#allocation7 + $0x28] sm:$0xf]
        %v1113 = vld [vmem:[#allocation7 + $0x2c] sm:$0xf]
        %v1114 = vld [vmem:[#allocation7 + $0x30] sm:$0xf]
        %v1115 = vld [vmem:[#allocation7 + $0x34] sm:$0xf]
        %v1116 = vld [vmem:[#allocation7 + $0x38] sm:$0xf]
        %v1117 = vld [vmem:[#allocation7 + $0x3c] sm:$0xf]
        %v1118 = vld [vmem:[#allocation7 + $0x40] sm:$0xf]
        %v1119 = vld [vmem:[#allocation7 + $0x44] sm:$0xf]
        %v1120 = vld [vmem:[#allocation7 + $0x48] sm:$0xf]
        %v1121 = vld [vmem:[#allocation7 + $0x4c] sm:$0xf]
        %v1122 = vld [vmem:[#allocation7 + $0x50] sm:$0xf]
        %v1123 = vld [vmem:[#allocation7 + $0x54] sm:$0xf]
        %v1124 = vld [vmem:[#allocation7 + $0x58] sm:$0xf]
        %v1125 = vld [vmem:[#allocation7 + $0x5c] sm:$0xf]
        %v1126 = vld [vmem:[#allocation7 + $0x60] sm:$0xf]
        %v1127 = vld [vmem:[#allocation7 + $0x64] sm:$0xf]
        %v1128 = vld [vmem:[#allocation7 + $0x68] sm:$0xf]
        %v1129 = vld [vmem:[#allocation7 + $0x6c] sm:$0xf]
        %v1130 = vld [vmem:[#allocation7 + $0x70] sm:$0xf]
        %v1131 = vld [vmem:[#allocation7 + $0x74] sm:$0xf]
        %v1132 = vld [vmem:[#allocation7 + $0x78] sm:$0xf]
        %v1133 = vld [vmem:[#allocation7 + $0x7c] sm:$0xf]
        %v1134 = vld [vmem:[#allocation7 + $0x80] sm:$0xf]
        %v1135 = vld [vmem:[#allocation7 + $0x84] sm:$0xf]
        %v1136 = vld [vmem:[#allocation7 + $0x88] sm:$0xf]
        %v1137 = vld [vmem:[#allocation7 + $0x8c] sm:$0xf]
        %v1138 = vld [vmem:[#allocation7 + $0x90] sm:$0xf]
        %v1139 = vld [vmem:[#allocation7 + $0x94] sm:$0xf]
        %v1140 = vld [vmem:[#allocation7 + $0x98] sm:$0xf]
        %v1141 = vld [vmem:[#allocation7 + $0x9c] sm:$0xf]
        %v1142 = vld [vmem:[#allocation7 + $0xa0] sm:$0xf]
        %v1143 = vld [vmem:[#allocation7 + $0xa4] sm:$0xf]
        %v1144 = vld [vmem:[#allocation7 + $0xa8] sm:$0xf]
        %v1145 = vld [vmem:[#allocation7 + $0xac] sm:$0xf]
        %v1146 = vld [vmem:[#allocation7 + $0xb0] sm:$0xf]
        %v1147 = vld [vmem:[#allocation7 + $0xb4] sm:$0xf]
        %v1148 = vld [vmem:[#allocation7 + $0xb8] sm:$0xf]
        %v1149 = vld [vmem:[#allocation7 + $0xbc] sm:$0xf]
        %v1150 = vld [vmem:[%s314 + $0xc] sm:$0xf]
        %v1151 = vunpack.c.l.bf16 %v1150
        %v1154 = vunpack.c.l.b16 %v1100
        %v1155 = vunpack.c.h.b16 %v1100
        %v1156 = vunpack.c.l.b16 %v1101
        %v1157 = vpack.c.b16 %v1154, %v1154
        %v1158 = vpack.c.b16 %v1155, %v1155
        %v1159 = vpack.c.b16 %v1156, %v1156
        %v1211 = vunpack.c.l.b16 %v1102
        %v1212 = vunpack.c.l.b16 %v1103
        %v1213 = vunpack.c.l.b16 %v1104
        %v1214 = vunpack.c.l.b16 %v1105
        %v1215 = vunpack.c.l.b16 %v1106
        %v1216 = vunpack.c.l.b16 %v1107
        %v1217 = vunpack.c.l.b16 %v1108
        %v1218 = vunpack.c.l.b16 %v1109
        %v1219 = vunpack.c.l.b16 %v1110
        %v1220 = vunpack.c.l.b16 %v1111
        %v1221 = vunpack.c.l.b16 %v1112
        %v1222 = vunpack.c.l.b16 %v1113
        %v1223 = vunpack.c.l.b16 %v1114
        %v1224 = vunpack.c.l.b16 %v1115
        %v1225 = vunpack.c.l.b16 %v1116
        %v1226 = vunpack.c.l.b16 %v1117
        %v1227 = vunpack.c.l.b16 %v1118
        %v1228 = vunpack.c.l.b16 %v1119
        %v1229 = vunpack.c.l.b16 %v1120
        %v1230 = vunpack.c.l.b16 %v1121
        %v1231 = vunpack.c.l.b16 %v1122
        %v1232 = vunpack.c.l.b16 %v1123
        %v1233 = vunpack.c.l.b16 %v1124
        %v1234 = vunpack.c.l.b16 %v1125
        %v1235 = vunpack.c.l.b16 %v1126
        %v1236 = vunpack.c.l.b16 %v1127
        %v1237 = vunpack.c.l.b16 %v1128
        %v1238 = vunpack.c.l.b16 %v1129
        %v1239 = vunpack.c.l.b16 %v1130
        %v1240 = vunpack.c.l.b16 %v1131
        %v1241 = vunpack.c.l.b16 %v1132
        %v1242 = vunpack.c.l.b16 %v1133
        %v1243 = vunpack.c.l.b16 %v1134
        %v1244 = vunpack.c.l.b16 %v1135
        %v1245 = vunpack.c.l.b16 %v1136
        %v1246 = vunpack.c.l.b16 %v1137
        %v1247 = vunpack.c.l.b16 %v1138
        %v1248 = vunpack.c.l.b16 %v1139
        %v1249 = vunpack.c.l.b16 %v1140
        %v1250 = vunpack.c.l.b16 %v1141
        %v1251 = vunpack.c.l.b16 %v1142
        %v1252 = vunpack.c.l.b16 %v1143
        %v1253 = vunpack.c.l.b16 %v1144
        %v1254 = vunpack.c.l.b16 %v1145
        %v1255 = vunpack.c.l.b16 %v1146
        %v1256 = vunpack.c.l.b16 %v1147
        %v1257 = vunpack.c.l.b16 %v1148
        %v1258 = vunpack.c.l.b16 %v1149
        %v1259 = vpack.c.b16 %v1212, %v1211
        %v1260 = vpack.c.b16 %v1214, %v1213
        %v1261 = vpack.c.b16 %v1216, %v1215
        %v1262 = vpack.c.b16 %v1218, %v1217
        %v1263 = vpack.c.b16 %v1220, %v1219
        %v1264 = vpack.c.b16 %v1222, %v1221
        %v1265 = vpack.c.b16 %v1224, %v1223
        %v1266 = vpack.c.b16 %v1226, %v1225
        %v1267 = vpack.c.b16 %v1228, %v1227
        %v1268 = vpack.c.b16 %v1230, %v1229
        %v1269 = vpack.c.b16 %v1232, %v1231
        %v1270 = vpack.c.b16 %v1234, %v1233
        %v1271 = vpack.c.b16 %v1236, %v1235
        %v1272 = vpack.c.b16 %v1238, %v1237
        %v1273 = vpack.c.b16 %v1240, %v1239
        %v1274 = vpack.c.b16 %v1242, %v1241
        %v1275 = vpack.c.b16 %v1244, %v1243
        %v1276 = vpack.c.b16 %v1246, %v1245
        %v1277 = vpack.c.b16 %v1248, %v1247
        %v1278 = vpack.c.b16 %v1250, %v1249
        %v1279 = vpack.c.b16 %v1252, %v1251
        %v1280 = vpack.c.b16 %v1254, %v1253
        %v1281 = vpack.c.b16 %v1256, %v1255
        %v1282 = vpack.c.b16 %v1258, %v1257
        %1307 = vmatpush.bf16.msra.mxu0 %v1266
        %1308 = vmatpush.bf16.msra.mxu0 %v1265
        %1309 = vmatpush.bf16.msra.mxu0 %v1264
        %1310 = vmatpush.bf16.msra.mxu0 %v1263
        %1311 = vmatpush.bf16.msra.mxu0 %v1262
        %1312 = vmatpush.bf16.msra.mxu0 %v1261
        %1313 = vmatpush.bf16.msra.mxu0 %v1260
        %1314 = vmatpush.bf16.msra.mxu0 %v1259
        %1315 = vmatmul.bf16.gmra.mxu0 %v1157
        %v1316 = vpop.f32.mrf.mxu0
        %v1317 = vadd.f32 %v1151, %v1316
        %v1318 = vpop.f32.mrf.mxu0
        %1319 = vdwg.mxu0
        %1320 = vmatpush.bf16.msra.mxu0 %v1274
        %1321 = vmatpush.bf16.msra.mxu0 %v1273
        %1322 = vmatpush.bf16.msra.mxu0 %v1272
        %1323 = vmatpush.bf16.msra.mxu0 %v1271
        %1324 = vmatpush.bf16.msra.mxu0 %v1270
        %1325 = vmatpush.bf16.msra.mxu0 %v1269
        %1326 = vmatpush.bf16.msra.mxu0 %v1268
        %1327 = vmatpush.bf16.msra.mxu0 %v1267
        %1328 = vmatmul.bf16.gmra.mxu0 %v1158
        %v1329 = vpop.f32.mrf.mxu0
        %v1330 = vadd.f32 %v1317, %v1329
        %v1331 = vpop.f32.mrf.mxu0
        %1332 = vdwg.mxu0
        %1333 = vmatpush.bf16.msra.mxu0 %v1282
        %1334 = vmatpush.bf16.msra.mxu0 %v1281
        %1335 = vmatpush.bf16.msra.mxu0 %v1280
        %1336 = vmatpush.bf16.msra.mxu0 %v1279
        %1337 = vmatpush.bf16.msra.mxu0 %v1278
        %1338 = vmatpush.bf16.msra.mxu0 %v1277
        %1339 = vmatpush.bf16.msra.mxu0 %v1276
        %1340 = vmatpush.bf16.msra.mxu0 %v1275
        %1341 = vmatmul.bf16.gmra.mxu0 %v1159
        %v1342 = vpop.f32.mrf.mxu0
        %v1343 = vadd.f32 %v1330, %v1342
        %v1344 = vpop.f32.mrf.mxu0
        %1345 = vdwg.mxu0
        %1346 = vst [vmem:[%s349 + $0x18] sm:$0xff] %v1343
        %v1347 = vld [vmem:[%s289 + $0x20] sm:$0xff]
        %v1348 = vld [vmem:[%s289 + $0x28] sm:$0xf]
        %v1349 = vld [vmem:[#allocation7] sm:$0xf]
        %v1350 = vld [vmem:[#allocation7 + $0x4] sm:$0xf]
        %v1351 = vld [vmem:[#allocation7 + $0x8] sm:$0xf]
        %v1352 = vld [vmem:[#allocation7 + $0xc] sm:$0xf]
        %v1353 = vld [vmem:[#allocation7 + $0x10] sm:$0xf]
        %v1354 = vld [vmem:[#allocation7 + $0x14] sm:$0xf]
        %v1355 = vld [vmem:[#allocation7 + $0x18] sm:$0xf]
        %v1356 = vld [vmem:[#allocation7 + $0x1c] sm:$0xf]
        %v1357 = vld [vmem:[#allocation7 + $0x20] sm:$0xf]
        %v1358 = vld [vmem:[#allocation7 + $0x24] sm:$0xf]
        %v1359 = vld [vmem:[#allocation7 + $0x28] sm:$0xf]
        %v1360 = vld [vmem:[#allocation7 + $0x2c] sm:$0xf]
        %v1361 = vld [vmem:[#allocation7 + $0x30] sm:$0xf]
        %v1362 = vld [vmem:[#allocation7 + $0x34] sm:$0xf]
        %v1363 = vld [vmem:[#allocation7 + $0x38] sm:$0xf]
        %v1364 = vld [vmem:[#allocation7 + $0x3c] sm:$0xf]
        %v1365 = vld [vmem:[#allocation7 + $0x40] sm:$0xf]
        %v1366 = vld [vmem:[#allocation7 + $0x44] sm:$0xf]
        %v1367 = vld [vmem:[#allocation7 + $0x48] sm:$0xf]
        %v1368 = vld [vmem:[#allocation7 + $0x4c] sm:$0xf]
        %v1369 = vld [vmem:[#allocation7 + $0x50] sm:$0xf]
        %v1370 = vld [vmem:[#allocation7 + $0x54] sm:$0xf]
        %v1371 = vld [vmem:[#allocation7 + $0x58] sm:$0xf]
        %v1372 = vld [vmem:[#allocation7 + $0x5c] sm:$0xf]
        %v1373 = vld [vmem:[#allocation7 + $0x60] sm:$0xf]
        %v1374 = vld [vmem:[#allocation7 + $0x64] sm:$0xf]
        %v1375 = vld [vmem:[#allocation7 + $0x68] sm:$0xf]
        %v1376 = vld [vmem:[#allocation7 + $0x6c] sm:$0xf]
        %v1377 = vld [vmem:[#allocation7 + $0x70] sm:$0xf]
        %v1378 = vld [vmem:[#allocation7 + $0x74] sm:$0xf]
        %v1379 = vld [vmem:[#allocation7 + $0x78] sm:$0xf]
        %v1380 = vld [vmem:[#allocation7 + $0x7c] sm:$0xf]
        %v1381 = vld [vmem:[#allocation7 + $0x80] sm:$0xf]
        %v1382 = vld [vmem:[#allocation7 + $0x84] sm:$0xf]
        %v1383 = vld [vmem:[#allocation7 + $0x88] sm:$0xf]
        %v1384 = vld [vmem:[#allocation7 + $0x8c] sm:$0xf]
        %v1385 = vld [vmem:[#allocation7 + $0x90] sm:$0xf]
        %v1386 = vld [vmem:[#allocation7 + $0x94] sm:$0xf]
        %v1387 = vld [vmem:[#allocation7 + $0x98] sm:$0xf]
        %v1388 = vld [vmem:[#allocation7 + $0x9c] sm:$0xf]
        %v1389 = vld [vmem:[#allocation7 + $0xa0] sm:$0xf]
        %v1390 = vld [vmem:[#allocation7 + $0xa4] sm:$0xf]
        %v1391 = vld [vmem:[#allocation7 + $0xa8] sm:$0xf]
        %v1392 = vld [vmem:[#allocation7 + $0xac] sm:$0xf]
        %v1393 = vld [vmem:[#allocation7 + $0xb0] sm:$0xf]
        %v1394 = vld [vmem:[#allocation7 + $0xb4] sm:$0xf]
        %v1395 = vld [vmem:[#allocation7 + $0xb8] sm:$0xf]
        %v1396 = vld [vmem:[#allocation7 + $0xbc] sm:$0xf]
        %v1397 = vld [vmem:[%s314 + $0x10] sm:$0xf]
        %v1398 = vunpack.c.l.bf16 %v1397
        %v1401 = vunpack.c.l.b16 %v1347
        %v1402 = vunpack.c.h.b16 %v1347
        %v1403 = vunpack.c.l.b16 %v1348
        %v1404 = vpack.c.b16 %v1401, %v1401
        %v1405 = vpack.c.b16 %v1402, %v1402
        %v1406 = vpack.c.b16 %v1403, %v1403
        %v1458 = vunpack.c.l.b16 %v1349
        %v1459 = vunpack.c.l.b16 %v1350
        %v1460 = vunpack.c.l.b16 %v1351
        %v1461 = vunpack.c.l.b16 %v1352
        %v1462 = vunpack.c.l.b16 %v1353
        %v1463 = vunpack.c.l.b16 %v1354
        %v1464 = vunpack.c.l.b16 %v1355
        %v1465 = vunpack.c.l.b16 %v1356
        %v1466 = vunpack.c.l.b16 %v1357
        %v1467 = vunpack.c.l.b16 %v1358
        %v1468 = vunpack.c.l.b16 %v1359
        %v1469 = vunpack.c.l.b16 %v1360
        %v1470 = vunpack.c.l.b16 %v1361
        %v1471 = vunpack.c.l.b16 %v1362
        %v1472 = vunpack.c.l.b16 %v1363
        %v1473 = vunpack.c.l.b16 %v1364
        %v1474 = vunpack.c.l.b16 %v1365
        %v1475 = vunpack.c.l.b16 %v1366
        %v1476 = vunpack.c.l.b16 %v1367
        %v1477 = vunpack.c.l.b16 %v1368
        %v1478 = vunpack.c.l.b16 %v1369
        %v1479 = vunpack.c.l.b16 %v1370
        %v1480 = vunpack.c.l.b16 %v1371
        %v1481 = vunpack.c.l.b16 %v1372
        %v1482 = vunpack.c.l.b16 %v1373
        %v1483 = vunpack.c.l.b16 %v1374
        %v1484 = vunpack.c.l.b16 %v1375
        %v1485 = vunpack.c.l.b16 %v1376
        %v1486 = vunpack.c.l.b16 %v1377
        %v1487 = vunpack.c.l.b16 %v1378
        %v1488 = vunpack.c.l.b16 %v1379
        %v1489 = vunpack.c.l.b16 %v1380
        %v1490 = vunpack.c.l.b16 %v1381
        %v1491 = vunpack.c.l.b16 %v1382
        %v1492 = vunpack.c.l.b16 %v1383
        %v1493 = vunpack.c.l.b16 %v1384
        %v1494 = vunpack.c.l.b16 %v1385
        %v1495 = vunpack.c.l.b16 %v1386
        %v1496 = vunpack.c.l.b16 %v1387
        %v1497 = vunpack.c.l.b16 %v1388
        %v1498 = vunpack.c.l.b16 %v1389
        %v1499 = vunpack.c.l.b16 %v1390
        %v1500 = vunpack.c.l.b16 %v1391
        %v1501 = vunpack.c.l.b16 %v1392
        %v1502 = vunpack.c.l.b16 %v1393
        %v1503 = vunpack.c.l.b16 %v1394
        %v1504 = vunpack.c.l.b16 %v1395
        %v1505 = vunpack.c.l.b16 %v1396
        %v1506 = vpack.c.b16 %v1459, %v1458
        %v1507 = vpack.c.b16 %v1461, %v1460
        %v1508 = vpack.c.b16 %v1463, %v1462
        %v1509 = vpack.c.b16 %v1465, %v1464
        %v1510 = vpack.c.b16 %v1467, %v1466
        %v1511 = vpack.c.b16 %v1469, %v1468
        %v1512 = vpack.c.b16 %v1471, %v1470
        %v1513 = vpack.c.b16 %v1473, %v1472
        %v1514 = vpack.c.b16 %v1475, %v1474
        %v1515 = vpack.c.b16 %v1477, %v1476
        %v1516 = vpack.c.b16 %v1479, %v1478
        %v1517 = vpack.c.b16 %v1481, %v1480
        %v1518 = vpack.c.b16 %v1483, %v1482
        %v1519 = vpack.c.b16 %v1485, %v1484
        %v1520 = vpack.c.b16 %v1487, %v1486
        %v1521 = vpack.c.b16 %v1489, %v1488
        %v1522 = vpack.c.b16 %v1491, %v1490
        %v1523 = vpack.c.b16 %v1493, %v1492
        %v1524 = vpack.c.b16 %v1495, %v1494
        %v1525 = vpack.c.b16 %v1497, %v1496
        %v1526 = vpack.c.b16 %v1499, %v1498
        %v1527 = vpack.c.b16 %v1501, %v1500
        %v1528 = vpack.c.b16 %v1503, %v1502
        %v1529 = vpack.c.b16 %v1505, %v1504
        %1554 = vmatpush.bf16.msra.mxu0 %v1513
        %1555 = vmatpush.bf16.msra.mxu0 %v1512
        %1556 = vmatpush.bf16.msra.mxu0 %v1511
        %1557 = vmatpush.bf16.msra.mxu0 %v1510
        %1558 = vmatpush.bf16.msra.mxu0 %v1509
        %1559 = vmatpush.bf16.msra.mxu0 %v1508
        %1560 = vmatpush.bf16.msra.mxu0 %v1507
        %1561 = vmatpush.bf16.msra.mxu0 %v1506
        %1562 = vmatmul.bf16.gmra.mxu0 %v1404
        %v1563 = vpop.f32.mrf.mxu0
        %v1564 = vadd.f32 %v1398, %v1563
        %v1565 = vpop.f32.mrf.mxu0
        %1566 = vdwg.mxu0
        %1567 = vmatpush.bf16.msra.mxu0 %v1521
        %1568 = vmatpush.bf16.msra.mxu0 %v1520
        %1569 = vmatpush.bf16.msra.mxu0 %v1519
        %1570 = vmatpush.bf16.msra.mxu0 %v1518
        %1571 = vmatpush.bf16.msra.mxu0 %v1517
        %1572 = vmatpush.bf16.msra.mxu0 %v1516
        %1573 = vmatpush.bf16.msra.mxu0 %v1515
        %1574 = vmatpush.bf16.msra.mxu0 %v1514
        %1575 = vmatmul.bf16.gmra.mxu0 %v1405
        %v1576 = vpop.f32.mrf.mxu0
        %v1577 = vadd.f32 %v1564, %v1576
        %v1578 = vpop.f32.mrf.mxu0
        %1579 = vdwg.mxu0
        %1580 = vmatpush.bf16.msra.mxu0 %v1529
        %1581 = vmatpush.bf16.msra.mxu0 %v1528
        %1582 = vmatpush.bf16.msra.mxu0 %v1527
        %1583 = vmatpush.bf16.msra.mxu0 %v1526
        %1584 = vmatpush.bf16.msra.mxu0 %v1525
        %1585 = vmatpush.bf16.msra.mxu0 %v1524
        %1586 = vmatpush.bf16.msra.mxu0 %v1523
        %1587 = vmatpush.bf16.msra.mxu0 %v1522
        %1588 = vmatmul.bf16.gmra.mxu0 %v1406
        %v1589 = vpop.f32.mrf.mxu0
        %v1590 = vadd.f32 %v1577, %v1589
        %v1591 = vpop.f32.mrf.mxu0
        %1592 = vdwg.mxu0
        %1593 = vst [vmem:[%s349 + $0x20] sm:$0xff] %v1590
        %v1594 = vld [vmem:[%s289 + $0x28] sm:$0xff]
        %v1595 = vld [vmem:[%s289 + $0x30] sm:$0xf]
        %v1596 = vld [vmem:[#allocation7] sm:$0xf]
        %v1597 = vld [vmem:[#allocation7 + $0x4] sm:$0xf]
        %v1598 = vld [vmem:[#allocation7 + $0x8] sm:$0xf]
        %v1599 = vld [vmem:[#allocation7 + $0xc] sm:$0xf]
        %v1600 = vld [vmem:[#allocation7 + $0x10] sm:$0xf]
        %v1601 = vld [vmem:[#allocation7 + $0x14] sm:$0xf]
        %v1602 = vld [vmem:[#allocation7 + $0x18] sm:$0xf]
        %v1603 = vld [vmem:[#allocation7 + $0x1c] sm:$0xf]
        %v1604 = vld [vmem:[#allocation7 + $0x20] sm:$0xf]
        %v1605 = vld [vmem:[#allocation7 + $0x24] sm:$0xf]
        %v1606 = vld [vmem:[#allocation7 + $0x28] sm:$0xf]
        %v1607 = vld [vmem:[#allocation7 + $0x2c] sm:$0xf]
        %v1608 = vld [vmem:[#allocation7 + $0x30] sm:$0xf]
        %v1609 = vld [vmem:[#allocation7 + $0x34] sm:$0xf]
        %v1610 = vld [vmem:[#allocation7 + $0x38] sm:$0xf]
        %v1611 = vld [vmem:[#allocation7 + $0x3c] sm:$0xf]
        %v1612 = vld [vmem:[#allocation7 + $0x40] sm:$0xf]
        %v1613 = vld [vmem:[#allocation7 + $0x44] sm:$0xf]
        %v1614 = vld [vmem:[#allocation7 + $0x48] sm:$0xf]
        %v1615 = vld [vmem:[#allocation7 + $0x4c] sm:$0xf]
        %v1616 = vld [vmem:[#allocation7 + $0x50] sm:$0xf]
        %v1617 = vld [vmem:[#allocation7 + $0x54] sm:$0xf]
        %v1618 = vld [vmem:[#allocation7 + $0x58] sm:$0xf]
        %v1619 = vld [vmem:[#allocation7 + $0x5c] sm:$0xf]
        %v1620 = vld [vmem:[#allocation7 + $0x60] sm:$0xf]
        %v1621 = vld [vmem:[#allocation7 + $0x64] sm:$0xf]
        %v1622 = vld [vmem:[#allocation7 + $0x68] sm:$0xf]
        %v1623 = vld [vmem:[#allocation7 + $0x6c] sm:$0xf]
        %v1624 = vld [vmem:[#allocation7 + $0x70] sm:$0xf]
        %v1625 = vld [vmem:[#allocation7 + $0x74] sm:$0xf]
        %v1626 = vld [vmem:[#allocation7 + $0x78] sm:$0xf]
        %v1627 = vld [vmem:[#allocation7 + $0x7c] sm:$0xf]
        %v1628 = vld [vmem:[#allocation7 + $0x80] sm:$0xf]
        %v1629 = vld [vmem:[#allocation7 + $0x84] sm:$0xf]
        %v1630 = vld [vmem:[#allocation7 + $0x88] sm:$0xf]
        %v1631 = vld [vmem:[#allocation7 + $0x8c] sm:$0xf]
        %v1632 = vld [vmem:[#allocation7 + $0x90] sm:$0xf]
        %v1633 = vld [vmem:[#allocation7 + $0x94] sm:$0xf]
        %v1634 = vld [vmem:[#allocation7 + $0x98] sm:$0xf]
        %v1635 = vld [vmem:[#allocation7 + $0x9c] sm:$0xf]
        %v1636 = vld [vmem:[#allocation7 + $0xa0] sm:$0xf]
        %v1637 = vld [vmem:[#allocation7 + $0xa4] sm:$0xf]
        %v1638 = vld [vmem:[#allocation7 + $0xa8] sm:$0xf]
        %v1639 = vld [vmem:[#allocation7 + $0xac] sm:$0xf]
        %v1640 = vld [vmem:[#allocation7 + $0xb0] sm:$0xf]
        %v1641 = vld [vmem:[#allocation7 + $0xb4] sm:$0xf]
        %v1642 = vld [vmem:[#allocation7 + $0xb8] sm:$0xf]
        %v1643 = vld [vmem:[#allocation7 + $0xbc] sm:$0xf]
        %v1644 = vld [vmem:[%s314 + $0x14] sm:$0xf]
        %v1645 = vunpack.c.l.bf16 %v1644
        %v1648 = vunpack.c.l.b16 %v1594
        %v1649 = vunpack.c.h.b16 %v1594
        %v1650 = vunpack.c.l.b16 %v1595
        %v1651 = vpack.c.b16 %v1648, %v1648
        %v1652 = vpack.c.b16 %v1649, %v1649
        %v1653 = vpack.c.b16 %v1650, %v1650
        %v1705 = vunpack.c.l.b16 %v1596
        %v1706 = vunpack.c.l.b16 %v1597
        %v1707 = vunpack.c.l.b16 %v1598
        %v1708 = vunpack.c.l.b16 %v1599
        %v1709 = vunpack.c.l.b16 %v1600
        %v1710 = vunpack.c.l.b16 %v1601
        %v1711 = vunpack.c.l.b16 %v1602
        %v1712 = vunpack.c.l.b16 %v1603
        %v1713 = vunpack.c.l.b16 %v1604
        %v1714 = vunpack.c.l.b16 %v1605
        %v1715 = vunpack.c.l.b16 %v1606
        %v1716 = vunpack.c.l.b16 %v1607
        %v1717 = vunpack.c.l.b16 %v1608
        %v1718 = vunpack.c.l.b16 %v1609
        %v1719 = vunpack.c.l.b16 %v1610
        %v1720 = vunpack.c.l.b16 %v1611
        %v1721 = vunpack.c.l.b16 %v1612
        %v1722 = vunpack.c.l.b16 %v1613
        %v1723 = vunpack.c.l.b16 %v1614
        %v1724 = vunpack.c.l.b16 %v1615
        %v1725 = vunpack.c.l.b16 %v1616
        %v1726 = vunpack.c.l.b16 %v1617
        %v1727 = vunpack.c.l.b16 %v1618
        %v1728 = vunpack.c.l.b16 %v1619
        %v1729 = vunpack.c.l.b16 %v1620
        %v1730 = vunpack.c.l.b16 %v1621
        %v1731 = vunpack.c.l.b16 %v1622
        %v1732 = vunpack.c.l.b16 %v1623
        %v1733 = vunpack.c.l.b16 %v1624
        %v1734 = vunpack.c.l.b16 %v1625
        %v1735 = vunpack.c.l.b16 %v1626
        %v1736 = vunpack.c.l.b16 %v1627
        %v1737 = vunpack.c.l.b16 %v1628
        %v1738 = vunpack.c.l.b16 %v1629
        %v1739 = vunpack.c.l.b16 %v1630
        %v1740 = vunpack.c.l.b16 %v1631
        %v1741 = vunpack.c.l.b16 %v1632
        %v1742 = vunpack.c.l.b16 %v1633
        %v1743 = vunpack.c.l.b16 %v1634
        %v1744 = vunpack.c.l.b16 %v1635
        %v1745 = vunpack.c.l.b16 %v1636
        %v1746 = vunpack.c.l.b16 %v1637
        %v1747 = vunpack.c.l.b16 %v1638
        %v1748 = vunpack.c.l.b16 %v1639
        %v1749 = vunpack.c.l.b16 %v1640
        %v1750 = vunpack.c.l.b16 %v1641
        %v1751 = vunpack.c.l.b16 %v1642
        %v1752 = vunpack.c.l.b16 %v1643
        %v1753 = vpack.c.b16 %v1706, %v1705
        %v1754 = vpack.c.b16 %v1708, %v1707
        %v1755 = vpack.c.b16 %v1710, %v1709
        %v1756 = vpack.c.b16 %v1712, %v1711
        %v1757 = vpack.c.b16 %v1714, %v1713
        %v1758 = vpack.c.b16 %v1716, %v1715
        %v1759 = vpack.c.b16 %v1718, %v1717
        %v1760 = vpack.c.b16 %v1720, %v1719
        %v1761 = vpack.c.b16 %v1722, %v1721
        %v1762 = vpack.c.b16 %v1724, %v1723
        %v1763 = vpack.c.b16 %v1726, %v1725
        %v1764 = vpack.c.b16 %v1728, %v1727
        %v1765 = vpack.c.b16 %v1730, %v1729
        %v1766 = vpack.c.b16 %v1732, %v1731
        %v1767 = vpack.c.b16 %v1734, %v1733
        %v1768 = vpack.c.b16 %v1736, %v1735
        %v1769 = vpack.c.b16 %v1738, %v1737
        %v1770 = vpack.c.b16 %v1740, %v1739
        %v1771 = vpack.c.b16 %v1742, %v1741
        %v1772 = vpack.c.b16 %v1744, %v1743
        %v1773 = vpack.c.b16 %v1746, %v1745
        %v1774 = vpack.c.b16 %v1748, %v1747
        %v1775 = vpack.c.b16 %v1750, %v1749
        %v1776 = vpack.c.b16 %v1752, %v1751
        %1801 = vmatpush.bf16.msra.mxu0 %v1760
        %1802 = vmatpush.bf16.msra.mxu0 %v1759
        %1803 = vmatpush.bf16.msra.mxu0 %v1758
        %1804 = vmatpush.bf16.msra.mxu0 %v1757
        %1805 = vmatpush.bf16.msra.mxu0 %v1756
        %1806 = vmatpush.bf16.msra.mxu0 %v1755
        %1807 = vmatpush.bf16.msra.mxu0 %v1754
        %1808 = vmatpush.bf16.msra.mxu0 %v1753
        %1809 = vmatmul.bf16.gmra.mxu0 %v1651
        %v1810 = vpop.f32.mrf.mxu0
        %v1811 = vadd.f32 %v1645, %v1810
        %v1812 = vpop.f32.mrf.mxu0
        %1813 = vdwg.mxu0
        %1814 = vmatpush.bf16.msra.mxu0 %v1768
        %1815 = vmatpush.bf16.msra.mxu0 %v1767
        %1816 = vmatpush.bf16.msra.mxu0 %v1766
        %1817 = vmatpush.bf16.msra.mxu0 %v1765
        %1818 = vmatpush.bf16.msra.mxu0 %v1764
        %1819 = vmatpush.bf16.msra.mxu0 %v1763
        %1820 = vmatpush.bf16.msra.mxu0 %v1762
        %1821 = vmatpush.bf16.msra.mxu0 %v1761
        %1822 = vmatmul.bf16.gmra.mxu0 %v1652
        %v1823 = vpop.f32.mrf.mxu0
        %v1824 = vadd.f32 %v1811, %v1823
        %v1825 = vpop.f32.mrf.mxu0
        %1826 = vdwg.mxu0
        %1827 = vmatpush.bf16.msra.mxu0 %v1776
        %1828 = vmatpush.bf16.msra.mxu0 %v1775
        %1829 = vmatpush.bf16.msra.mxu0 %v1774
        %1830 = vmatpush.bf16.msra.mxu0 %v1773
        %1831 = vmatpush.bf16.msra.mxu0 %v1772
        %1832 = vmatpush.bf16.msra.mxu0 %v1771
        %1833 = vmatpush.bf16.msra.mxu0 %v1770
        %1834 = vmatpush.bf16.msra.mxu0 %v1769
        %1835 = vmatmul.bf16.gmra.mxu0 %v1653
        %v1836 = vpop.f32.mrf.mxu0
        %v1837 = vadd.f32 %v1824, %v1836
        %v1838 = vpop.f32.mrf.mxu0
        %1839 = vdwg.mxu0
        %1840 = vst [vmem:[%s349 + $0x28] sm:$0xff] %v1837
        %v1841 = vld [vmem:[%s289 + $0x30] sm:$0xff]
        %v1842 = vld [vmem:[%s289 + $0x38] sm:$0xf]
        %v1843 = vld [vmem:[#allocation7] sm:$0xf]
        %v1844 = vld [vmem:[#allocation7 + $0x4] sm:$0xf]
        %v1845 = vld [vmem:[#allocation7 + $0x8] sm:$0xf]
        %v1846 = vld [vmem:[#allocation7 + $0xc] sm:$0xf]
        %v1847 = vld [vmem:[#allocation7 + $0x10] sm:$0xf]
        %v1848 = vld [vmem:[#allocation7 + $0x14] sm:$0xf]
        %v1849 = vld [vmem:[#allocation7 + $0x18] sm:$0xf]
        %v1850 = vld [vmem:[#allocation7 + $0x1c] sm:$0xf]
        %v1851 = vld [vmem:[#allocation7 + $0x20] sm:$0xf]
        %v1852 = vld [vmem:[#allocation7 + $0x24] sm:$0xf]
        %v1853 = vld [vmem:[#allocation7 + $0x28] sm:$0xf]
        %v1854 = vld [vmem:[#allocation7 + $0x2c] sm:$0xf]
        %v1855 = vld [vmem:[#allocation7 + $0x30] sm:$0xf]
        %v1856 = vld [vmem:[#allocation7 + $0x34] sm:$0xf]
        %v1857 = vld [vmem:[#allocation7 + $0x38] sm:$0xf]
        %v1858 = vld [vmem:[#allocation7 + $0x3c] sm:$0xf]
        %v1859 = vld [vmem:[#allocation7 + $0x40] sm:$0xf]
        %v1860 = vld [vmem:[#allocation7 + $0x44] sm:$0xf]
        %v1861 = vld [vmem:[#allocation7 + $0x48] sm:$0xf]
        %v1862 = vld [vmem:[#allocation7 + $0x4c] sm:$0xf]
        %v1863 = vld [vmem:[#allocation7 + $0x50] sm:$0xf]
        %v1864 = vld [vmem:[#allocation7 + $0x54] sm:$0xf]
        %v1865 = vld [vmem:[#allocation7 + $0x58] sm:$0xf]
        %v1866 = vld [vmem:[#allocation7 + $0x5c] sm:$0xf]
        %v1867 = vld [vmem:[#allocation7 + $0x60] sm:$0xf]
        %v1868 = vld [vmem:[#allocation7 + $0x64] sm:$0xf]
        %v1869 = vld [vmem:[#allocation7 + $0x68] sm:$0xf]
        %v1870 = vld [vmem:[#allocation7 + $0x6c] sm:$0xf]
        %v1871 = vld [vmem:[#allocation7 + $0x70] sm:$0xf]
        %v1872 = vld [vmem:[#allocation7 + $0x74] sm:$0xf]
        %v1873 = vld [vmem:[#allocation7 + $0x78] sm:$0xf]
        %v1874 = vld [vmem:[#allocation7 + $0x7c] sm:$0xf]
        %v1875 = vld [vmem:[#allocation7 + $0x80] sm:$0xf]
        %v1876 = vld [vmem:[#allocation7 + $0x84] sm:$0xf]
        %v1877 = vld [vmem:[#allocation7 + $0x88] sm:$0xf]
        %v1878 = vld [vmem:[#allocation7 + $0x8c] sm:$0xf]
        %v1879 = vld [vmem:[#allocation7 + $0x90] sm:$0xf]
        %v1880 = vld [vmem:[#allocation7 + $0x94] sm:$0xf]
        %v1881 = vld [vmem:[#allocation7 + $0x98] sm:$0xf]
        %v1882 = vld [vmem:[#allocation7 + $0x9c] sm:$0xf]
        %v1883 = vld [vmem:[#allocation7 + $0xa0] sm:$0xf]
        %v1884 = vld [vmem:[#allocation7 + $0xa4] sm:$0xf]
        %v1885 = vld [vmem:[#allocation7 + $0xa8] sm:$0xf]
        %v1886 = vld [vmem:[#allocation7 + $0xac] sm:$0xf]
        %v1887 = vld [vmem:[#allocation7 + $0xb0] sm:$0xf]
        %v1888 = vld [vmem:[#allocation7 + $0xb4] sm:$0xf]
        %v1889 = vld [vmem:[#allocation7 + $0xb8] sm:$0xf]
        %v1890 = vld [vmem:[#allocation7 + $0xbc] sm:$0xf]
        %v1891 = vld [vmem:[%s314 + $0x18] sm:$0xf]
        %v1892 = vunpack.c.l.bf16 %v1891
        %v1895 = vunpack.c.l.b16 %v1841
        %v1896 = vunpack.c.h.b16 %v1841
        %v1897 = vunpack.c.l.b16 %v1842
        %v1898 = vpack.c.b16 %v1895, %v1895
        %v1899 = vpack.c.b16 %v1896, %v1896
        %v1900 = vpack.c.b16 %v1897, %v1897
        %v1952 = vunpack.c.l.b16 %v1843
        %v1953 = vunpack.c.l.b16 %v1844
        %v1954 = vunpack.c.l.b16 %v1845
        %v1955 = vunpack.c.l.b16 %v1846
        %v1956 = vunpack.c.l.b16 %v1847
        %v1957 = vunpack.c.l.b16 %v1848
        %v1958 = vunpack.c.l.b16 %v1849
        %v1959 = vunpack.c.l.b16 %v1850
        %v1960 = vunpack.c.l.b16 %v1851
        %v1961 = vunpack.c.l.b16 %v1852
        %v1962 = vunpack.c.l.b16 %v1853
        %v1963 = vunpack.c.l.b16 %v1854
        %v1964 = vunpack.c.l.b16 %v1855
        %v1965 = vunpack.c.l.b16 %v1856
        %v1966 = vunpack.c.l.b16 %v1857
        %v1967 = vunpack.c.l.b16 %v1858
        %v1968 = vunpack.c.l.b16 %v1859
        %v1969 = vunpack.c.l.b16 %v1860
        %v1970 = vunpack.c.l.b16 %v1861
        %v1971 = vunpack.c.l.b16 %v1862
        %v1972 = vunpack.c.l.b16 %v1863
        %v1973 = vunpack.c.l.b16 %v1864
        %v1974 = vunpack.c.l.b16 %v1865
        %v1975 = vunpack.c.l.b16 %v1866
        %v1976 = vunpack.c.l.b16 %v1867
        %v1977 = vunpack.c.l.b16 %v1868
        %v1978 = vunpack.c.l.b16 %v1869
        %v1979 = vunpack.c.l.b16 %v1870
        %v1980 = vunpack.c.l.b16 %v1871
        %v1981 = vunpack.c.l.b16 %v1872
        %v1982 = vunpack.c.l.b16 %v1873
        %v1983 = vunpack.c.l.b16 %v1874
        %v1984 = vunpack.c.l.b16 %v1875
        %v1985 = vunpack.c.l.b16 %v1876
        %v1986 = vunpack.c.l.b16 %v1877
        %v1987 = vunpack.c.l.b16 %v1878
        %v1988 = vunpack.c.l.b16 %v1879
        %v1989 = vunpack.c.l.b16 %v1880
        %v1990 = vunpack.c.l.b16 %v1881
        %v1991 = vunpack.c.l.b16 %v1882
        %v1992 = vunpack.c.l.b16 %v1883
        %v1993 = vunpack.c.l.b16 %v1884
        %v1994 = vunpack.c.l.b16 %v1885
        %v1995 = vunpack.c.l.b16 %v1886
        %v1996 = vunpack.c.l.b16 %v1887
        %v1997 = vunpack.c.l.b16 %v1888
        %v1998 = vunpack.c.l.b16 %v1889
        %v1999 = vunpack.c.l.b16 %v1890
        %v2000 = vpack.c.b16 %v1953, %v1952
        %v2001 = vpack.c.b16 %v1955, %v1954
        %v2002 = vpack.c.b16 %v1957, %v1956
        %v2003 = vpack.c.b16 %v1959, %v1958
        %v2004 = vpack.c.b16 %v1961, %v1960
        %v2005 = vpack.c.b16 %v1963, %v1962
        %v2006 = vpack.c.b16 %v1965, %v1964
        %v2007 = vpack.c.b16 %v1967, %v1966
        %v2008 = vpack.c.b16 %v1969, %v1968
        %v2009 = vpack.c.b16 %v1971, %v1970
        %v2010 = vpack.c.b16 %v1973, %v1972
        %v2011 = vpack.c.b16 %v1975, %v1974
        %v2012 = vpack.c.b16 %v1977, %v1976
        %v2013 = vpack.c.b16 %v1979, %v1978
        %v2014 = vpack.c.b16 %v1981, %v1980
        %v2015 = vpack.c.b16 %v1983, %v1982
        %v2016 = vpack.c.b16 %v1985, %v1984
        %v2017 = vpack.c.b16 %v1987, %v1986
        %v2018 = vpack.c.b16 %v1989, %v1988
        %v2019 = vpack.c.b16 %v1991, %v1990
        %v2020 = vpack.c.b16 %v1993, %v1992
        %v2021 = vpack.c.b16 %v1995, %v1994
        %v2022 = vpack.c.b16 %v1997, %v1996
        %v2023 = vpack.c.b16 %v1999, %v1998
        %2048 = vmatpush.bf16.msra.mxu0 %v2007
        %2049 = vmatpush.bf16.msra.mxu0 %v2006
        %2050 = vmatpush.bf16.msra.mxu0 %v2005
        %2051 = vmatpush.bf16.msra.mxu0 %v2004
        %2052 = vmatpush.bf16.msra.mxu0 %v2003
        %2053 = vmatpush.bf16.msra.mxu0 %v2002
        %2054 = vmatpush.bf16.msra.mxu0 %v2001
        %2055 = vmatpush.bf16.msra.mxu0 %v2000
        %2056 = vmatmul.bf16.gmra.mxu0 %v1898
        %v2057 = vpop.f32.mrf.mxu0
        %v2058 = vadd.f32 %v1892, %v2057
        %v2059 = vpop.f32.mrf.mxu0
        %2060 = vdwg.mxu0
        %2061 = vmatpush.bf16.msra.mxu0 %v2015
        %2062 = vmatpush.bf16.msra.mxu0 %v2014
        %2063 = vmatpush.bf16.msra.mxu0 %v2013
        %2064 = vmatpush.bf16.msra.mxu0 %v2012
        %2065 = vmatpush.bf16.msra.mxu0 %v2011
        %2066 = vmatpush.bf16.msra.mxu0 %v2010
        %2067 = vmatpush.bf16.msra.mxu0 %v2009
        %2068 = vmatpush.bf16.msra.mxu0 %v2008
        %2069 = vmatmul.bf16.gmra.mxu0 %v1899
        %v2070 = vpop.f32.mrf.mxu0
        %v2071 = vadd.f32 %v2058, %v2070
        %v2072 = vpop.f32.mrf.mxu0
        %2073 = vdwg.mxu0
        %2074 = vmatpush.bf16.msra.mxu0 %v2023
        %2075 = vmatpush.bf16.msra.mxu0 %v2022
        %2076 = vmatpush.bf16.msra.mxu0 %v2021
        %2077 = vmatpush.bf16.msra.mxu0 %v2020
        %2078 = vmatpush.bf16.msra.mxu0 %v2019
        %2079 = vmatpush.bf16.msra.mxu0 %v2018
        %2080 = vmatpush.bf16.msra.mxu0 %v2017
        %2081 = vmatpush.bf16.msra.mxu0 %v2016
        %2082 = vmatmul.bf16.gmra.mxu0 %v1900
        %v2083 = vpop.f32.mrf.mxu0
        %v2084 = vadd.f32 %v2071, %v2083
        %v2085 = vpop.f32.mrf.mxu0
        %2086 = vdwg.mxu0
        %2087 = vst [vmem:[%s349 + $0x30] sm:$0xff] %v2084
        %v2088 = vld [vmem:[%s289 + $0x38] sm:$0xff]
        %v2089 = vld [vmem:[#allocation7] sm:$0xf]
        %v2090 = vld [vmem:[#allocation7 + $0x4] sm:$0xf]
        %v2091 = vld [vmem:[#allocation7 + $0x8] sm:$0xf]
        %v2092 = vld [vmem:[#allocation7 + $0xc] sm:$0xf]
        %v2093 = vld [vmem:[#allocation7 + $0x10] sm:$0xf]
        %v2094 = vld [vmem:[#allocation7 + $0x14] sm:$0xf]
        %v2095 = vld [vmem:[#allocation7 + $0x18] sm:$0xf]
        %v2096 = vld [vmem:[#allocation7 + $0x1c] sm:$0xf]
        %v2097 = vld [vmem:[#allocation7 + $0x20] sm:$0xf]
        %v2098 = vld [vmem:[#allocation7 + $0x24] sm:$0xf]
        %v2099 = vld [vmem:[#allocation7 + $0x28] sm:$0xf]
        %v2100 = vld [vmem:[#allocation7 + $0x2c] sm:$0xf]
        %v2101 = vld [vmem:[#allocation7 + $0x30] sm:$0xf]
        %v2102 = vld [vmem:[#allocation7 + $0x34] sm:$0xf]
        %v2103 = vld [vmem:[#allocation7 + $0x38] sm:$0xf]
        %v2104 = vld [vmem:[#allocation7 + $0x3c] sm:$0xf]
        %v2105 = vld [vmem:[#allocation7 + $0x40] sm:$0xf]
        %v2106 = vld [vmem:[#allocation7 + $0x44] sm:$0xf]
        %v2107 = vld [vmem:[#allocation7 + $0x48] sm:$0xf]
        %v2108 = vld [vmem:[#allocation7 + $0x4c] sm:$0xf]
        %v2109 = vld [vmem:[#allocation7 + $0x50] sm:$0xf]
        %v2110 = vld [vmem:[#allocation7 + $0x54] sm:$0xf]
        %v2111 = vld [vmem:[#allocation7 + $0x58] sm:$0xf]
        %v2112 = vld [vmem:[#allocation7 + $0x5c] sm:$0xf]
        %v2113 = vld [vmem:[#allocation7 + $0x60] sm:$0xf]
        %v2114 = vld [vmem:[#allocation7 + $0x64] sm:$0xf]
        %v2115 = vld [vmem:[#allocation7 + $0x68] sm:$0xf]
        %v2116 = vld [vmem:[#allocation7 + $0x6c] sm:$0xf]
        %v2117 = vld [vmem:[#allocation7 + $0x70] sm:$0xf]
        %v2118 = vld [vmem:[#allocation7 + $0x74] sm:$0xf]
        %v2119 = vld [vmem:[#allocation7 + $0x78] sm:$0xf]
        %v2120 = vld [vmem:[#allocation7 + $0x7c] sm:$0xf]
        %v2121 = vld [vmem:[%s299] sm:$0xf]
        %v2122 = vld [vmem:[#allocation7 + $0x80] sm:$0xf]
        %v2123 = vld [vmem:[#allocation7 + $0x84] sm:$0xf]
        %v2124 = vld [vmem:[#allocation7 + $0x88] sm:$0xf]
        %v2125 = vld [vmem:[#allocation7 + $0x8c] sm:$0xf]
        %v2126 = vld [vmem:[#allocation7 + $0x90] sm:$0xf]
        %v2127 = vld [vmem:[#allocation7 + $0x94] sm:$0xf]
        %v2128 = vld [vmem:[#allocation7 + $0x98] sm:$0xf]
        %v2129 = vld [vmem:[#allocation7 + $0x9c] sm:$0xf]
        %v2130 = vld [vmem:[#allocation7 + $0xa0] sm:$0xf]
        %v2131 = vld [vmem:[#allocation7 + $0xa4] sm:$0xf]
        %v2132 = vld [vmem:[#allocation7 + $0xa8] sm:$0xf]
        %v2133 = vld [vmem:[#allocation7 + $0xac] sm:$0xf]
        %v2134 = vld [vmem:[#allocation7 + $0xb0] sm:$0xf]
        %v2135 = vld [vmem:[#allocation7 + $0xb4] sm:$0xf]
        %v2136 = vld [vmem:[#allocation7 + $0xb8] sm:$0xf]
        %v2137 = vld [vmem:[#allocation7 + $0xbc] sm:$0xf]
        %v2154 = vunpack.c.l.b16 %v2122
        %v2155 = vunpack.c.l.b16 %v2123
        %v2156 = vunpack.c.l.b16 %v2124
        %v2157 = vunpack.c.l.b16 %v2125
        %v2158 = vunpack.c.l.b16 %v2126
        %v2159 = vunpack.c.l.b16 %v2127
        %v2160 = vunpack.c.l.b16 %v2128
        %v2161 = vunpack.c.l.b16 %v2129
        %v2162 = vunpack.c.l.b16 %v2130
        %v2163 = vunpack.c.l.b16 %v2131
        %v2164 = vunpack.c.l.b16 %v2132
        %v2165 = vunpack.c.l.b16 %v2133
        %v2166 = vunpack.c.l.b16 %v2134
        %v2167 = vunpack.c.l.b16 %v2135
        %v2168 = vunpack.c.l.b16 %v2136
        %v2169 = vunpack.c.l.b16 %v2137
        %v2170 = vpack.c.b16 %v2155, %v2154
        %v2171 = vpack.c.b16 %v2157, %v2156
        %v2172 = vpack.c.b16 %v2159, %v2158
        %v2173 = vpack.c.b16 %v2161, %v2160
        %v2174 = vpack.c.b16 %v2163, %v2162
        %v2175 = vpack.c.b16 %v2165, %v2164
        %v2176 = vpack.c.b16 %v2167, %v2166
        %v2177 = vpack.c.b16 %v2169, %v2168
        %2186 = vmatpush.bf16.msra.mxu0 %v2177
        %2187 = vmatpush.bf16.msra.mxu0 %v2176
        %2188 = vmatpush.bf16.msra.mxu0 %v2175
        %2189 = vmatpush.bf16.msra.mxu0 %v2174
        %2190 = vmatpush.bf16.msra.mxu0 %v2173
        %2191 = vmatpush.bf16.msra.mxu0 %v2172
        %2192 = vmatpush.bf16.msra.mxu0 %v2171
        %2193 = vmatpush.bf16.msra.mxu0 %v2170
        %2194 = vmatmul.bf16.gmra.mxu0 %v2121
        %v2195 = vpop.f32.mrf.mxu0
        %v2196 = vadd.f32 0.0, %v2195
        %v2197 = vpop.f32.mrf.mxu0
        %2198 = vdwg.mxu0
        %v2200 = vunpack.c.l.b16 %v2088
        %v2201 = vunpack.c.h.b16 %v2088
        %v2202 = vpack.c.b16 %v2200, %v2200
        %v2203 = vpack.c.b16 %v2201, %v2201
        %v2238 = vunpack.c.l.b16 %v2089
        %v2239 = vunpack.c.l.b16 %v2090
        %v2240 = vunpack.c.l.b16 %v2091
        %v2241 = vunpack.c.l.b16 %v2092
        %v2242 = vunpack.c.l.b16 %v2093
        %v2243 = vunpack.c.l.b16 %v2094
        %v2244 = vunpack.c.l.b16 %v2095
        %v2245 = vunpack.c.l.b16 %v2096
        %v2246 = vunpack.c.l.b16 %v2097
        %v2247 = vunpack.c.l.b16 %v2098
        %v2248 = vunpack.c.l.b16 %v2099
        %v2249 = vunpack.c.l.b16 %v2100
        %v2250 = vunpack.c.l.b16 %v2101
        %v2251 = vunpack.c.l.b16 %v2102
        %v2252 = vunpack.c.l.b16 %v2103
        %v2253 = vunpack.c.l.b16 %v2104
        %v2254 = vunpack.c.l.b16 %v2105
        %v2255 = vunpack.c.l.b16 %v2106
        %v2256 = vunpack.c.l.b16 %v2107
        %v2257 = vunpack.c.l.b16 %v2108
        %v2258 = vunpack.c.l.b16 %v2109
        %v2259 = vunpack.c.l.b16 %v2110
        %v2260 = vunpack.c.l.b16 %v2111
        %v2261 = vunpack.c.l.b16 %v2112
        %v2262 = vunpack.c.l.b16 %v2113
        %v2263 = vunpack.c.l.b16 %v2114
        %v2264 = vunpack.c.l.b16 %v2115
        %v2265 = vunpack.c.l.b16 %v2116
        %v2266 = vunpack.c.l.b16 %v2117
        %v2267 = vunpack.c.l.b16 %v2118
        %v2268 = vunpack.c.l.b16 %v2119
        %v2269 = vunpack.c.l.b16 %v2120
        %v2270 = vpack.c.b16 %v2239, %v2238
        %v2271 = vpack.c.b16 %v2241, %v2240
        %v2272 = vpack.c.b16 %v2243, %v2242
        %v2273 = vpack.c.b16 %v2245, %v2244
        %v2274 = vpack.c.b16 %v2247, %v2246
        %v2275 = vpack.c.b16 %v2249, %v2248
        %v2276 = vpack.c.b16 %v2251, %v2250
        %v2277 = vpack.c.b16 %v2253, %v2252
        %v2278 = vpack.c.b16 %v2255, %v2254
        %v2279 = vpack.c.b16 %v2257, %v2256
        %v2280 = vpack.c.b16 %v2259, %v2258
        %v2281 = vpack.c.b16 %v2261, %v2260
        %v2282 = vpack.c.b16 %v2263, %v2262
        %v2283 = vpack.c.b16 %v2265, %v2264
        %v2284 = vpack.c.b16 %v2267, %v2266
        %v2285 = vpack.c.b16 %v2269, %v2268
        %2302 = vmatpush.bf16.msra.mxu0 %v2277
        %2303 = vmatpush.bf16.msra.mxu0 %v2276
        %2304 = vmatpush.bf16.msra.mxu0 %v2275
        %2305 = vmatpush.bf16.msra.mxu0 %v2274
        %2306 = vmatpush.bf16.msra.mxu0 %v2273
        %2307 = vmatpush.bf16.msra.mxu0 %v2272
        %2308 = vmatpush.bf16.msra.mxu0 %v2271
        %2309 = vmatpush.bf16.msra.mxu0 %v2270
        %2310 = vmatmul.bf16.gmra.mxu0 %v2202
        %v2311 = vpop.f32.mrf.mxu0
        %v2312 = vadd.f32 %v2196, %v2311
        %v2313 = vpop.f32.mrf.mxu0
        %2314 = vdwg.mxu0
        %2315 = vmatpush.bf16.msra.mxu0 %v2285
        %2316 = vmatpush.bf16.msra.mxu0 %v2284
        %2317 = vmatpush.bf16.msra.mxu0 %v2283
        %2318 = vmatpush.bf16.msra.mxu0 %v2282
        %2319 = vmatpush.bf16.msra.mxu0 %v2281
        %2320 = vmatpush.bf16.msra.mxu0 %v2280
        %2321 = vmatpush.bf16.msra.mxu0 %v2279
        %2322 = vmatpush.bf16.msra.mxu0 %v2278
        %2323 = vmatmul.bf16.gmra.mxu0 %v2203
        %v2324 = vpop.f32.mrf.mxu0
        %v2325 = vadd.f32 %v2312, %v2324
        %v2326 = vpop.f32.mrf.mxu0
        %2327 = vdwg.mxu0
        %s2328 = smul.u32 %s32, 8
        %s2329 = sadd.s32 %s2328, 7
        %v2330 = vlaneseq
        %v2331 = vand.u32 %v2330, 127
        %s2332 = smul.u32 %s2329, 128
        %v2333 = vstv %s2332
        %v2334 = vadd.s32 %v2331, %v2333
        %vm2335 = vcmp.lt.s32.totalorder %v2334, 1984
        %v2336 = vsel %vm2335, %v2325, 0.0
        %v2337 = vld [vmem:[%s314 + $0x1c] sm:$0xf]
        %v2338 = vunpack.c.l.bf16 %v2337
        %v2339 = vadd.f32 %v2336, %v2338
        %2340 = vst [vmem:[%s349 + $0x38] sm:$0xff] %v2339
        %s2341 = sand.u32 %s158, 1
        %s2342 = scalar_lea.sflag [#allocation4], %s2341
        %s2343 = sand.u32 %s158, 1
        %s2344 = smul.addr %s2343, 64
        %s2345 = scalar_lea.vmem [#allocation10], %s2344
        // Predicated region
        $region53: #{tpu_custom_call.1} parent=35 // pred_check
          %p2346 = pneg %p168
        $region54: #{tpu_custom_call.1} parent=35 // pred_check_branch
          %2348 = sbr.rel (%p2346) target = $region56
        $region55: #{tpu_custom_call.1} parent=35 // pred_region
          %s2349 = smul.u32 8, %s32
          %2351 = vsyncadd %s2342, 0
          %s2352 = smul.addr %s31, 16
          %s2353 = sadd.s32 %s2349, %s2352
          %s2354 = smul.addr %s2353, 8
          %s2355 = scalar_lea.hbm %s4, %s2354
          %s2357 = sshll.u32 %s2345, 4
          %s2358 = int_to_ptr.vmem [resolvable:$true] %s2357
          %s2359 = sshll.u32 %s2355, 4
          %s2360 = int_to_ptr.hbm [resolvable:$true] %s2359
          %2362 = dma.vmem_to_hbm [thread:$0]  %s2358, 1024, %s2360, %s2342
        $region56: #{tpu_custom_call.1} parent=35 // pred_fallthru
          _
      $region36: #{tpu_custom_call.1} parent=5 // pred_fallthru
        _
      %p2363 = scmp.le.s32.totalorder 2, %s22
      // Predicated region
      $region57: #{tpu_custom_call.1} parent=5 // pred_check
        %p2364 = pneg %p2363
      $region58: #{tpu_custom_call.1} parent=5 // pred_check_branch
        %2366 = sbr.rel (%p2364) target = $region60
      $region59: #{tpu_custom_call.1} parent=5 // pred_region
        %s2367 = ssub.s32 %s22, 2
        // Predicated region
        $region61: #{tpu_custom_call.1} parent=59 // pred_check
          %p2368 = pneg %p174
        $region62: #{tpu_custom_call.1} parent=59 // pred_check_branch
          %2370 = sbr.rel (%p2368) target = $region64
        $region63: #{tpu_custom_call.1} parent=59 // pred_region
          %s2371 = sand.u32 %s159, 1
          %s2372 = scalar_lea.sflag [#allocation4], %s2371
          %s2373 = sand.u32 %s159, 1
          %s2374 = smul.addr %s2373, 64
          %s2375 = scalar_lea.vmem [#allocation10], %s2374
          %2377 = dma.done %s2372, 1024
        $region64: #{tpu_custom_call.1} parent=59 // pred_fallthru
          _
      $region60: #{tpu_custom_call.1} parent=5 // pred_fallthru
        _
    $region6: #{tpu_custom_call.1} parent=1 // loop_footer
      %s26 = sadd.s32 1, %s22
    $region7: #{tpu_custom_call.1} parent=1 // loop_footer_branch
      %21 = sbr.rel target = $region3
    $region8: #{tpu_custom_call.1} parent=1 // loop_exit
      _
    %2378 = vsyncpa [#allocation3], 1
    %s2379 = scalar_lea.sflag [#allocation3], 1
    %2380 = vsyncpa %s2379, 1
    %2381 = vsyncpa [#allocation6], 1
    %s2382 = scalar_lea.sflag [#allocation6], 1
    %2383 = vsyncpa %s2382, 1
    %2384 = vsyncpa [#allocation9], 1
    %s2385 = scalar_lea.sflag [#allocation9], 1
    %2386 = vsyncpa %s2385, 1
    %2387 = vsyncpa [#allocation4], 1
    %s2388 = scalar_lea.sflag [#allocation4], 1
    %2389 = vsyncpa %s2388, 1

</llo_original>
